<compile_context>
chip_gen: v7x
topology: tpu7x:2x2x1
jax: 0.10.0
libtpu: 0.0.40
codegen_flags: <defaults>
</compile_context>

<pallas_src>
import jax
import jax.numpy as jnp
from jax import lax
from jax.experimental import pallas as pl
from jax.experimental.pallas import tpu as pltpu

HIDDEN = 50
IN_DIM = 4
OUT_DIM = 1
IN_PAD = 16        # input features padded to the bf16 sublane-pack width
D_PAD = 64         # hidden width (50) padded so bf16 (16,128) tiling is clean
NUM_LAYERS = 5
NUM_RATIONALS = 4
CHUNK = 256        # inner lane chunk: bounds live ranges (~<= 64 vregs peak)


def gl_kernel(coef_ref,   # SMEM (4, 8) f32: per-rational flattened (4,2) coeffs
              x_ref,      # VMEM (IN_PAD, TM) f32      -- batch on lanes
              w1_ref,     # VMEM (D_PAD, IN_PAD) bf16  -- fc1 weight (out, in)
              wp_ref,     # VMEM (3, D_PAD, D_PAD) bf16 -- fc2..fc4 weights (out, in)
              bp_ref,     # VMEM (5, D_PAD, 1) f32     -- biases fc1..fc5
              w5_ref,     # VMEM (D_PAD, 1) f32        -- fc5 weight column
              o_ref):     # VMEM (OUT_DIM, TM) f32

    # Read the 32 rational coefficients once at kernel entry (scalar SMEM loads).
    # Row layout (row-major flatten of the (4, 2) torch param):
    #   [a3, q3, a2, q2, a1, q1, a0, q0]   (exponents 3,2,1,0 ; cols = P, Q)
    coefs = [[coef_ref[k, j] for j in range(8)] for k in range(NUM_RATIONALS)]

    def rational(h, k):
        # P(h)/Q(h); denominator cubic term (q3) is structurally zero in
        # GL.forward(), so it is dropped; h^2 is shared between P and Q.
        a3, _q3, a2, q2, a1, q1, a0, q0 = coefs[k]
        h2 = h * h
        den = q2 * h2 + (q1 * h + q0)
        inv = pl.reciprocal(den, approx=True)        # EUP slot, frees VALU
        num = (a3 * h + a2) * h2 + (a1 * h + a0)
        return num * inv

    n_chunks = x_ref.shape[1] // CHUNK

    def chunk_body(c, carry):
        off = pl.multiple_of(c * CHUNK, CHUNK)

        # ---- layer 1 (fc1): K=IN_PAD bf16 MXU dot (MXU is otherwise idle) ----
        xb = x_ref[:, pl.ds(off, CHUNK)].astype(jnp.bfloat16)       # (IN_PAD, CH)
        h = jnp.dot(w1_ref[...], xb,
                    preferred_element_type=jnp.float32) + bp_ref[0]
        h = rational(h, 0)

        # ---- layers 2..4 (fc2..fc4): 64x64 bf16 MXU dots, batch on N ----
        for j in range(3):
            h = jnp.dot(wp_ref[j], h.astype(jnp.bfloat16),
                        preferred_element_type=jnp.float32) + bp_ref[j + 1]
            h = rational(h, j + 1)

        # ---- layer 5 (fc5): OUT_DIM=1 projection as a sublane reduction ----
        out = jnp.sum(w5_ref[...] * h, axis=0, keepdims=True)       # (1, CH)
        o_ref[:, pl.ds(off, CHUNK)] = (out + bp_ref[4, 0:1, :]).astype(o_ref.dtype)
        return carry

    lax.fori_loop(0, n_chunks, chunk_body, 0)


def _round_up(n, m):
    return ((n + m - 1) // m) * m


def gl_forward(x, params, rational_coeffs, *, tm_max=2048):
    """x: (N, 4) float32. params: list of 5 (W, b) with W (in, out), b (1, out)."""
    N = x.shape[0]

    # Outer batch tile on the lane axis: multiple of CHUNK, large enough to
    # amortize per-grid-step overhead, small enough that for large N each v7x
    # TensorCore gets several steps (N/8 rule).  VMEM is never a constraint
    # here (<0.5 MiB/step), so the tile is chosen for grid balance only;
    # vreg pressure is handled by the in-kernel CHUNK loop.
    tm = max(CHUNK, min(tm_max, _round_up(pl.cdiv(N, 8), CHUNK)))
    n_pad = _round_up(max(N, tm), tm)
    grid = n_pad // tm

    # Lane-major input: (features, batch), zero-padded rows 4..15 and padded lanes.
    xt = jnp.zeros((IN_PAD, n_pad), jnp.float32).at[:IN_DIM, :N].set(x.T)

    # Pack weights as (out, in), zero-padded; zero padding keeps the extra
    # hidden rows mathematically inert through every layer.
    w1 = jnp.zeros((D_PAD, IN_PAD), jnp.float32)
    wp = jnp.zeros((3, D_PAD, D_PAD), jnp.float32)
    bp = jnp.zeros((NUM_LAYERS, D_PAD, 1), jnp.float32)
    w5 = jnp.zeros((D_PAD, 1), jnp.float32)

    (W1, b1), (W2, b2), (W3, b3), (W4, b4), (W5, b5) = params
    w1 = w1.at[:HIDDEN, :IN_DIM].set(W1.T)
    for j, W in enumerate((W2, W3, W4)):
        wp = wp.at[j, :HIDDEN, :HIDDEN].set(W.T)
    w5 = w5.at[:HIDDEN, 0].set(W5[:, 0])
    for l, b in enumerate((b1, b2, b3, b4, b5)):
        bp = bp.at[l, :b.shape[-1], 0].set(b.reshape(-1))

    # bf16 weights for the MXU dots (f32 accumulate inside the kernel).
    w1 = w1.astype(jnp.bfloat16)
    wp = wp.astype(jnp.bfloat16)

    # Flatten each (4, 2) coeff matrix row-major -> (4 rationals, 8 coeffs).
    coef_flat = jnp.stack([c.reshape(-1) for c in rational_coeffs], axis=0)

    grid_spec = pltpu.PrefetchScalarGridSpec(
        num_scalar_prefetch=0,
        grid=(grid,),
        in_specs=[
            pl.BlockSpec(memory_space=pltpu.MemorySpace.SMEM),                # coeffs
            pl.BlockSpec((IN_PAD, tm), lambda i: (0, i)),                     # x^T tile
            pl.BlockSpec((D_PAD, IN_PAD), lambda i: (0, 0)),                  # fc1 W
            pl.BlockSpec((3, D_PAD, D_PAD), lambda i: (0, 0, 0)),             # fc2..4 W
            pl.BlockSpec((NUM_LAYERS, D_PAD, 1), lambda i: (0, 0, 0)),        # biases
            pl.BlockSpec((D_PAD, 1), lambda i: (0, 0)),                       # fc5 W
        ],
        out_specs=pl.BlockSpec((OUT_DIM, tm), lambda i: (0, i)),
    )

    out_t = pl.pallas_call(
        gl_kernel,
        out_shape=jax.ShapeDtypeStruct((OUT_DIM, n_pad), jnp.float32),
        grid_spec=grid_spec,
        compiler_params=pltpu.CompilerParams(
            dimension_semantics=("parallel",)),
    )(coef_flat, xt, w1, wp, bp, w5)

    return out_t[:, :N].T                                  # (N, 1)


# ----------------------- parameter init + reference -----------------------

def init_linear(key, fan_in, fan_out):
    """Deterministic init mirroring PyTorch Linear bounds (kaiming-uniform-ish)."""
    kw, kb = jax.random.split(key)
    bound = 1.0 / jnp.sqrt(jnp.float32(fan_in))
    w = jax.random.uniform(kw, (fan_in, fan_out), jnp.float32, -bound, bound)
    b = jax.random.uniform(kb, (1, fan_out), jnp.float32, -bound, bound)
    return w, b


def rational_init_coeffs():
    # GreenLearning Rational init (best (3,2) rational approx of ReLU),
    # with the denominator x^3 coefficient zeroed as done in forward().
    return jnp.array([[1.1915, 0.0],
                      [1.5957, 2.383],
                      [0.5,    0.0],
                      [0.0218, 1.0]], dtype=jnp.float32)


def rational_ref(h, c):
    exps = jnp.array([3.0, 2.0, 1.0, 0.0], dtype=jnp.float32)
    X = h[..., None] ** exps            # (..., 4)
    PQ = X @ c                          # (..., 2)
    return PQ[..., 0] / PQ[..., 1]


def gl_ref(x, params, coeffs):
    h = x
    for k in range(4):
        w, b = params[k]
        h = h @ w + b
        h = rational_ref(h, coeffs[k])
    w, b = params[4]
    return h @ w + b


if __name__ == "__main__":
    key = jax.random.PRNGKey(0)
    kx, k1, k2, k3, k4, k5 = jax.random.split(key, 6)

    N = 384        # small batch; exercises tiling + padding (tm=256, grid=2)
    x = jax.random.normal(kx, (N, IN_DIM), jnp.float32)

    dims = [(IN_DIM, HIDDEN), (HIDDEN, HIDDEN), (HIDDEN, HIDDEN),
            (HIDDEN, HIDDEN), (HIDDEN, OUT_DIM)]
    params = [init_linear(k, fi, fo)
              for k, (fi, fo) in zip([k1, k2, k3, k4, k5], dims)]
    coeffs = [rational_init_coeffs() for _ in range(NUM_RATIONALS)]

    out = gl_forward(x, params, coeffs)
    out = jax.block_until_ready(out)

    ref = gl_ref(x, params, coeffs)
    assert out.shape == (N, OUT_DIM)
    # bf16 MXU dots + approx EUP reciprocal -> looser tolerance than exact f32
    # (per perf review; expected abs error here is ~5e-3, bound set with margin).
    err = jnp.max(jnp.abs(out - ref))
    assert err < 3e-2, f"max abs err {err}"

    print("KERNEL_OK")
</pallas_src>

<mosaic_0001>
module attributes {stable_mosaic.version = 11 : i64} {
  func.func @gl_kernel(%arg0: i32, %arg1: memref<4x8xf32, #tpu.memory_space<smem>>, %arg2: memref<16x256xf32, #tpu.memory_space<vmem>>, %arg3: memref<64x16xbf16, #tpu.memory_space<vmem>>, %arg4: memref<3x64x64xbf16, #tpu.memory_space<vmem>>, %arg5: memref<5x64x1xf32, #tpu.memory_space<vmem>>, %arg6: memref<64x1xf32, #tpu.memory_space<vmem>>, %arg7: memref<1x256xf32, #tpu.memory_space<vmem>>) attributes {dimension_semantics = [#tpu.dimension_semantics<parallel>], iteration_bounds = array<i64: 2>, scalar_prefetch = 0 : i64, scratch_operands = 0 : i64, tpu.core_type = #tpu.core_type<tc>, window_params = [{transform_indices = @transform_0, window_bounds = array<i64: 4, 8>}, {transform_indices = @transform_1, window_bounds = array<i64: 16, 256>}, {pipeline_mode = #tpu.pipeline_mode<synchronous>, transform_indices = @transform_2, window_bounds = array<i64: 64, 16>}, {pipeline_mode = #tpu.pipeline_mode<synchronous>, transform_indices = @transform_3, window_bounds = array<i64: 3, 64, 64>}, {pipeline_mode = #tpu.pipeline_mode<synchronous>, transform_indices = @transform_4, window_bounds = array<i64: 5, 64, 1>}, {pipeline_mode = #tpu.pipeline_mode<synchronous>, transform_indices = @transform_5, window_bounds = array<i64: 64, 1>}, {transform_indices = @transform_6, window_bounds = array<i64: 1, 256>}]} {
    %c0 = arith.constant 0 : index
    %c0_0 = arith.constant 0 : index
    %0 = memref.load %arg1[%c0, %c0_0] : memref<4x8xf32, #tpu.memory_space<smem>>
    %c0_1 = arith.constant 0 : index
    %c2 = arith.constant 2 : index
    %1 = memref.load %arg1[%c0_1, %c2] : memref<4x8xf32, #tpu.memory_space<smem>>
    %c0_2 = arith.constant 0 : index
    %c3 = arith.constant 3 : index
    %2 = memref.load %arg1[%c0_2, %c3] : memref<4x8xf32, #tpu.memory_space<smem>>
    %c0_3 = arith.constant 0 : index
    %c4 = arith.constant 4 : index
    %3 = memref.load %arg1[%c0_3, %c4] : memref<4x8xf32, #tpu.memory_space<smem>>
    %c0_4 = arith.constant 0 : index
    %c5 = arith.constant 5 : index
    %4 = memref.load %arg1[%c0_4, %c5] : memref<4x8xf32, #tpu.memory_space<smem>>
    %c0_5 = arith.constant 0 : index
    %c6 = arith.constant 6 : index
    %5 = memref.load %arg1[%c0_5, %c6] : memref<4x8xf32, #tpu.memory_space<smem>>
    %c0_6 = arith.constant 0 : index
    %c7 = arith.constant 7 : index
    %6 = memref.load %arg1[%c0_6, %c7] : memref<4x8xf32, #tpu.memory_space<smem>>
    %c1 = arith.constant 1 : index
    %c0_7 = arith.constant 0 : index
    %7 = memref.load %arg1[%c1, %c0_7] : memref<4x8xf32, #tpu.memory_space<smem>>
    %c1_8 = arith.constant 1 : index
    %c2_9 = arith.constant 2 : index
    %8 = memref.load %arg1[%c1_8, %c2_9] : memref<4x8xf32, #tpu.memory_space<smem>>
    %c1_10 = arith.constant 1 : index
    %c3_11 = arith.constant 3 : index
    %9 = memref.load %arg1[%c1_10, %c3_11] : memref<4x8xf32, #tpu.memory_space<smem>>
    %c1_12 = arith.constant 1 : index
    %c4_13 = arith.constant 4 : index
    %10 = memref.load %arg1[%c1_12, %c4_13] : memref<4x8xf32, #tpu.memory_space<smem>>
    %c1_14 = arith.constant 1 : index
    %c5_15 = arith.constant 5 : index
    %11 = memref.load %arg1[%c1_14, %c5_15] : memref<4x8xf32, #tpu.memory_space<smem>>
    %c1_16 = arith.constant 1 : index
    %c6_17 = arith.constant 6 : index
    %12 = memref.load %arg1[%c1_16, %c6_17] : memref<4x8xf32, #tpu.memory_space<smem>>
    %c1_18 = arith.constant 1 : index
    %c7_19 = arith.constant 7 : index
    %13 = memref.load %arg1[%c1_18, %c7_19] : memref<4x8xf32, #tpu.memory_space<smem>>
    %c2_20 = arith.constant 2 : index
    %c0_21 = arith.constant 0 : index
    %14 = memref.load %arg1[%c2_20, %c0_21] : memref<4x8xf32, #tpu.memory_space<smem>>
    %c2_22 = arith.constant 2 : index
    %c2_23 = arith.constant 2 : index
    %15 = memref.load %arg1[%c2_22, %c2_23] : memref<4x8xf32, #tpu.memory_space<smem>>
    %c2_24 = arith.constant 2 : index
    %c3_25 = arith.constant 3 : index
    %16 = memref.load %arg1[%c2_24, %c3_25] : memref<4x8xf32, #tpu.memory_space<smem>>
    %c2_26 = arith.constant 2 : index
    %c4_27 = arith.constant 4 : index
    %17 = memref.load %arg1[%c2_26, %c4_27] : memref<4x8xf32, #tpu.memory_space<smem>>
    %c2_28 = arith.constant 2 : index
    %c5_29 = arith.constant 5 : index
    %18 = memref.load %arg1[%c2_28, %c5_29] : memref<4x8xf32, #tpu.memory_space<smem>>
    %c2_30 = arith.constant 2 : index
    %c6_31 = arith.constant 6 : index
    %19 = memref.load %arg1[%c2_30, %c6_31] : memref<4x8xf32, #tpu.memory_space<smem>>
    %c2_32 = arith.constant 2 : index
    %c7_33 = arith.constant 7 : index
    %20 = memref.load %arg1[%c2_32, %c7_33] : memref<4x8xf32, #tpu.memory_space<smem>>
    %c3_34 = arith.constant 3 : index
    %c0_35 = arith.constant 0 : index
    %21 = memref.load %arg1[%c3_34, %c0_35] : memref<4x8xf32, #tpu.memory_space<smem>>
    %c3_36 = arith.constant 3 : index
    %c2_37 = arith.constant 2 : index
    %22 = memref.load %arg1[%c3_36, %c2_37] : memref<4x8xf32, #tpu.memory_space<smem>>
    %c3_38 = arith.constant 3 : index
    %c3_39 = arith.constant 3 : index
    %23 = memref.load %arg1[%c3_38, %c3_39] : memref<4x8xf32, #tpu.memory_space<smem>>
    %c3_40 = arith.constant 3 : index
    %c4_41 = arith.constant 4 : index
    %24 = memref.load %arg1[%c3_40, %c4_41] : memref<4x8xf32, #tpu.memory_space<smem>>
    %c3_42 = arith.constant 3 : index
    %c5_43 = arith.constant 5 : index
    %25 = memref.load %arg1[%c3_42, %c5_43] : memref<4x8xf32, #tpu.memory_space<smem>>
    %c3_44 = arith.constant 3 : index
    %c6_45 = arith.constant 6 : index
    %26 = memref.load %arg1[%c3_44, %c6_45] : memref<4x8xf32, #tpu.memory_space<smem>>
    %c3_46 = arith.constant 3 : index
    %c7_47 = arith.constant 7 : index
    %27 = memref.load %arg1[%c3_46, %c7_47] : memref<4x8xf32, #tpu.memory_space<smem>>
    %c0_i32 = arith.constant 0 : i32
    %c256_i32 = arith.constant 256 : i32
    %28 = arith.muli %c0_i32, %c256_i32 : i32
    %29 = tpu.assume_multiple %28, 256 : i32
    %c0_48 = arith.constant 0 : index
    %30 = arith.index_cast %29 : i32 to index
    %31 = vector.load %arg2[%c0_48, %30] : memref<16x256xf32, #tpu.memory_space<vmem>>, vector<16x256xf32>
    %32 = arith.truncf %31 : vector<16x256xf32> to vector<16x256xbf16>
    %c0_49 = arith.constant 0 : index
    %c0_50 = arith.constant 0 : index
    %33 = vector.load %arg3[%c0_49, %c0_50] : memref<64x16xbf16, #tpu.memory_space<vmem>>, vector<64x16xbf16>
    %cst = arith.constant dense<0.000000e+00> : vector<64x256xf32>
    %34 = tpu.matmul %33, %32, %cst {dimension_numbers = #tpu.dot_dimension_numbers<[1], [0], [0], [1], [0, 0, 1, 1], [], []>} : vector<64x16xbf16>, vector<16x256xbf16>, vector<64x256xf32> -> vector<64x256xf32>
    %c0_51 = arith.constant 0 : index
    %c0_52 = arith.constant 0 : index
    %c0_53 = arith.constant 0 : index
    %35 = vector.load %arg5[%c0_51, %c0_52, %c0_53] : memref<5x64x1xf32, #tpu.memory_space<vmem>>, vector<1x64x1xf32>
    %36 = vector.shape_cast %35 : vector<1x64x1xf32> to vector<64x1xf32>
    %37 = vector.broadcast %36 : vector<64x1xf32> to vector<64x256xf32>
    %38 = arith.addf %34, %37 : vector<64x256xf32>
    %39 = arith.mulf %38, %38 : vector<64x256xf32>
    %40 = vector.broadcast %2 : f32 to vector<64x256xf32>
    %41 = arith.mulf %40, %39 : vector<64x256xf32>
    %42 = vector.broadcast %4 : f32 to vector<64x256xf32>
    %43 = arith.mulf %42, %38 : vector<64x256xf32>
    %44 = vector.broadcast %6 : f32 to vector<64x256xf32>
    %45 = arith.addf %43, %44 : vector<64x256xf32>
    %46 = arith.addf %41, %45 : vector<64x256xf32>
    %47 = tpu.reciprocal %46 {approx = true} : vector<64x256xf32> -> vector<64x256xf32>
    %48 = vector.broadcast %0 : f32 to vector<64x256xf32>
    %49 = arith.mulf %48, %38 : vector<64x256xf32>
    %50 = vector.broadcast %1 : f32 to vector<64x256xf32>
    %51 = arith.addf %49, %50 : vector<64x256xf32>
    %52 = arith.mulf %51, %39 : vector<64x256xf32>
    %53 = vector.broadcast %3 : f32 to vector<64x256xf32>
    %54 = arith.mulf %53, %38 : vector<64x256xf32>
    %55 = vector.broadcast %5 : f32 to vector<64x256xf32>
    %56 = arith.addf %54, %55 : vector<64x256xf32>
    %57 = arith.addf %52, %56 : vector<64x256xf32>
    %58 = arith.mulf %57, %47 : vector<64x256xf32>
    %c0_54 = arith.constant 0 : index
    %c0_55 = arith.constant 0 : index
    %c0_56 = arith.constant 0 : index
    %59 = vector.load %arg4[%c0_54, %c0_55, %c0_56] : memref<3x64x64xbf16, #tpu.memory_space<vmem>>, vector<1x64x64xbf16>
    %60 = vector.shape_cast %59 : vector<1x64x64xbf16> to vector<64x64xbf16>
    %61 = arith.truncf %58 : vector<64x256xf32> to vector<64x256xbf16>
    %cst_57 = arith.constant dense<0.000000e+00> : vector<64x256xf32>
    %62 = tpu.matmul %60, %61, %cst_57 {dimension_numbers = #tpu.dot_dimension_numbers<[1], [0], [0], [1], [0, 0, 1, 1], [], []>} : vector<64x64xbf16>, vector<64x256xbf16>, vector<64x256xf32> -> vector<64x256xf32>
    %c1_58 = arith.constant 1 : index
    %c0_59 = arith.constant 0 : index
    %c0_60 = arith.constant 0 : index
    %63 = vector.load %arg5[%c1_58, %c0_59, %c0_60] : memref<5x64x1xf32, #tpu.memory_space<vmem>>, vector<1x64x1xf32>
    %64 = vector.shape_cast %63 : vector<1x64x1xf32> to vector<64x1xf32>
    %65 = vector.broadcast %64 : vector<64x1xf32> to vector<64x256xf32>
    %66 = arith.addf %62, %65 : vector<64x256xf32>
    %67 = arith.mulf %66, %66 : vector<64x256xf32>
    %68 = vector.broadcast %9 : f32 to vector<64x256xf32>
    %69 = arith.mulf %68, %67 : vector<64x256xf32>
    %70 = vector.broadcast %11 : f32 to vector<64x256xf32>
    %71 = arith.mulf %70, %66 : vector<64x256xf32>
    %72 = vector.broadcast %13 : f32 to vector<64x256xf32>
    %73 = arith.addf %71, %72 : vector<64x256xf32>
    %74 = arith.addf %69, %73 : vector<64x256xf32>
    %75 = tpu.reciprocal %74 {approx = true} : vector<64x256xf32> -> vector<64x256xf32>
    %76 = vector.broadcast %7 : f32 to vector<64x256xf32>
    %77 = arith.mulf %76, %66 : vector<64x256xf32>
    %78 = vector.broadcast %8 : f32 to vector<64x256xf32>
    %79 = arith.addf %77, %78 : vector<64x256xf32>
    %80 = arith.mulf %79, %67 : vector<64x256xf32>
    %81 = vector.broadcast %10 : f32 to vector<64x256xf32>
    %82 = arith.mulf %81, %66 : vector<64x256xf32>
    %83 = vector.broadcast %12 : f32 to vector<64x256xf32>
    %84 = arith.addf %82, %83 : vector<64x256xf32>
    %85 = arith.addf %80, %84 : vector<64x256xf32>
    %86 = arith.mulf %85, %75 : vector<64x256xf32>
    %c1_61 = arith.constant 1 : index
    %c0_62 = arith.constant 0 : index
    %c0_63 = arith.constant 0 : index
    %87 = vector.load %arg4[%c1_61, %c0_62, %c0_63] : memref<3x64x64xbf16, #tpu.memory_space<vmem>>, vector<1x64x64xbf16>
    %88 = vector.shape_cast %87 : vector<1x64x64xbf16> to vector<64x64xbf16>
    %89 = arith.truncf %86 : vector<64x256xf32> to vector<64x256xbf16>
    %cst_64 = arith.constant dense<0.000000e+00> : vector<64x256xf32>
    %90 = tpu.matmul %88, %89, %cst_64 {dimension_numbers = #tpu.dot_dimension_numbers<[1], [0], [0], [1], [0, 0, 1, 1], [], []>} : vector<64x64xbf16>, vector<64x256xbf16>, vector<64x256xf32> -> vector<64x256xf32>
    %c2_65 = arith.constant 2 : index
    %c0_66 = arith.constant 0 : index
    %c0_67 = arith.constant 0 : index
    %91 = vector.load %arg5[%c2_65, %c0_66, %c0_67] : memref<5x64x1xf32, #tpu.memory_space<vmem>>, vector<1x64x1xf32>
    %92 = vector.shape_cast %91 : vector<1x64x1xf32> to vector<64x1xf32>
    %93 = vector.broadcast %92 : vector<64x1xf32> to vector<64x256xf32>
    %94 = arith.addf %90, %93 : vector<64x256xf32>
    %95 = arith.mulf %94, %94 : vector<64x256xf32>
    %96 = vector.broadcast %16 : f32 to vector<64x256xf32>
    %97 = arith.mulf %96, %95 : vector<64x256xf32>
    %98 = vector.broadcast %18 : f32 to vector<64x256xf32>
    %99 = arith.mulf %98, %94 : vector<64x256xf32>
    %100 = vector.broadcast %20 : f32 to vector<64x256xf32>
    %101 = arith.addf %99, %100 : vector<64x256xf32>
    %102 = arith.addf %97, %101 : vector<64x256xf32>
    %103 = tpu.reciprocal %102 {approx = true} : vector<64x256xf32> -> vector<64x256xf32>
    %104 = vector.broadcast %14 : f32 to vector<64x256xf32>
    %105 = arith.mulf %104, %94 : vector<64x256xf32>
    %106 = vector.broadcast %15 : f32 to vector<64x256xf32>
    %107 = arith.addf %105, %106 : vector<64x256xf32>
    %108 = arith.mulf %107, %95 : vector<64x256xf32>
    %109 = vector.broadcast %17 : f32 to vector<64x256xf32>
    %110 = arith.mulf %109, %94 : vector<64x256xf32>
    %111 = vector.broadcast %19 : f32 to vector<64x256xf32>
    %112 = arith.addf %110, %111 : vector<64x256xf32>
    %113 = arith.addf %108, %112 : vector<64x256xf32>
    %114 = arith.mulf %113, %103 : vector<64x256xf32>
    %c2_68 = arith.constant 2 : index
    %c0_69 = arith.constant 0 : index
    %c0_70 = arith.constant 0 : index
    %115 = vector.load %arg4[%c2_68, %c0_69, %c0_70] : memref<3x64x64xbf16, #tpu.memory_space<vmem>>, vector<1x64x64xbf16>
    %116 = vector.shape_cast %115 : vector<1x64x64xbf16> to vector<64x64xbf16>
    %117 = arith.truncf %114 : vector<64x256xf32> to vector<64x256xbf16>
    %cst_71 = arith.constant dense<0.000000e+00> : vector<64x256xf32>
    %118 = tpu.matmul %116, %117, %cst_71 {dimension_numbers = #tpu.dot_dimension_numbers<[1], [0], [0], [1], [0, 0, 1, 1], [], []>} : vector<64x64xbf16>, vector<64x256xbf16>, vector<64x256xf32> -> vector<64x256xf32>
    %c3_72 = arith.constant 3 : index
    %c0_73 = arith.constant 0 : index
    %c0_74 = arith.constant 0 : index
    %119 = vector.load %arg5[%c3_72, %c0_73, %c0_74] : memref<5x64x1xf32, #tpu.memory_space<vmem>>, vector<1x64x1xf32>
    %120 = vector.shape_cast %119 : vector<1x64x1xf32> to vector<64x1xf32>
    %121 = vector.broadcast %120 : vector<64x1xf32> to vector<64x256xf32>
    %122 = arith.addf %118, %121 : vector<64x256xf32>
    %123 = arith.mulf %122, %122 : vector<64x256xf32>
    %124 = vector.broadcast %23 : f32 to vector<64x256xf32>
    %125 = arith.mulf %124, %123 : vector<64x256xf32>
    %126 = vector.broadcast %25 : f32 to vector<64x256xf32>
    %127 = arith.mulf %126, %122 : vector<64x256xf32>
    %128 = vector.broadcast %27 : f32 to vector<64x256xf32>
    %129 = arith.addf %127, %128 : vector<64x256xf32>
    %130 = arith.addf %125, %129 : vector<64x256xf32>
    %131 = tpu.reciprocal %130 {approx = true} : vector<64x256xf32> -> vector<64x256xf32>
    %132 = vector.broadcast %21 : f32 to vector<64x256xf32>
    %133 = arith.mulf %132, %122 : vector<64x256xf32>
    %134 = vector.broadcast %22 : f32 to vector<64x256xf32>
    %135 = arith.addf %133, %134 : vector<64x256xf32>
    %136 = arith.mulf %135, %123 : vector<64x256xf32>
    %137 = vector.broadcast %24 : f32 to vector<64x256xf32>
    %138 = arith.mulf %137, %122 : vector<64x256xf32>
    %139 = vector.broadcast %26 : f32 to vector<64x256xf32>
    %140 = arith.addf %138, %139 : vector<64x256xf32>
    %141 = arith.addf %136, %140 : vector<64x256xf32>
    %142 = arith.mulf %141, %131 : vector<64x256xf32>
    %c0_75 = arith.constant 0 : index
    %c0_76 = arith.constant 0 : index
    %143 = vector.load %arg6[%c0_75, %c0_76] : memref<64x1xf32, #tpu.memory_space<vmem>>, vector<64x1xf32>
    %144 = vector.broadcast %143 : vector<64x1xf32> to vector<64x256xf32>
    %145 = arith.mulf %144, %142 : vector<64x256xf32>
    %cst_77 = arith.constant dense<0.000000e+00> : vector<256xf32>
    %146 = vector.multi_reduction <add>, %145, %cst_77 [0] : vector<64x256xf32> to vector<256xf32>
    %147 = vector.shape_cast %146 : vector<256xf32> to vector<1x256xf32>
    %c4_78 = arith.constant 4 : index
    %c0_79 = arith.constant 0 : index
    %c0_80 = arith.constant 0 : index
    %148 = vector.load %arg5[%c4_78, %c0_79, %c0_80] : memref<5x64x1xf32, #tpu.memory_space<vmem>>, vector<1x1x1xf32>
    %149 = vector.shape_cast %148 : vector<1x1x1xf32> to vector<1x1xf32>
    %150 = vector.broadcast %149 : vector<1x1xf32> to vector<1x256xf32>
    %151 = arith.addf %147, %150 : vector<1x256xf32>
    %c0_81 = arith.constant 0 : index
    %152 = arith.index_cast %29 : i32 to index
    %153 = vector.load %arg7[%c0_81, %152] : memref<1x256xf32, #tpu.memory_space<vmem>>, vector<1x256xf32>
    tpu.vector_store %arg7[%c0_81, %152], %151 {strides = array<i32>} : memref<1x256xf32, #tpu.memory_space<vmem>>, vector<1x256xf32>,
    %c1_i32 = arith.constant 1 : i32
    return
  }
  func.func @transform_0(%arg0: i32) -> (i32, i32) {
    %c0_i32 = arith.constant 0 : i32
    %c0_i32_0 = arith.constant 0 : i32
    %c0_i32_1 = arith.constant 0 : i32
    return %c0_i32, %c0_i32_0 : i32, i32
  }
  func.func @transform_1(%arg0: i32) -> (i32, i32) {
    %c0_i32 = arith.constant 0 : i32
    %c0_i32_0 = arith.constant 0 : i32
    return %c0_i32, %arg0 : i32, i32
  }
  func.func @transform_2(%arg0: i32) -> (i32, i32) {
    %c0_i32 = arith.constant 0 : i32
    %c0_i32_0 = arith.constant 0 : i32
    %c0_i32_1 = arith.constant 0 : i32
    return %c0_i32, %c0_i32_0 : i32, i32
  }
  func.func @transform_3(%arg0: i32) -> (i32, i32, i32) {
    %c0_i32 = arith.constant 0 : i32
    %c0_i32_0 = arith.constant 0 : i32
    %c0_i32_1 = arith.constant 0 : i32
    %c0_i32_2 = arith.constant 0 : i32
    return %c0_i32, %c0_i32_0, %c0_i32_1 : i32, i32, i32
  }
  func.func @transform_4(%arg0: i32) -> (i32, i32, i32) {
    %c0_i32 = arith.constant 0 : i32
    %c0_i32_0 = arith.constant 0 : i32
    %c0_i32_1 = arith.constant 0 : i32
    %c0_i32_2 = arith.constant 0 : i32
    return %c0_i32, %c0_i32_0, %c0_i32_1 : i32, i32, i32
  }
  func.func @transform_5(%arg0: i32) -> (i32, i32) {
    %c0_i32 = arith.constant 0 : i32
    %c0_i32_0 = arith.constant 0 : i32
    %c0_i32_1 = arith.constant 0 : i32
    return %c0_i32, %c0_i32_0 : i32, i32
  }
  func.func @transform_6(%arg0: i32) -> (i32, i32) {
    %c0_i32 = arith.constant 0 : i32
    %c0_i32_0 = arith.constant 0 : i32
    return %c0_i32, %arg0 : i32, i32
  }
}

</mosaic_0001>

<llo_original>
// kernel: tpu_custom_call.1
$region0: #{tpu_custom_call.1}
  #allocation0 [shape = 'u32[]', space=smem, size = 0x4, offset = 0x4, fixed_abs, tag = 'smem constant byte address 0x4 - core index']
  #allocation1 [shape = 'u32[144,128]{1,0:T(1,128)}', space=vmem, size = 0x12000, scoped, tag = 'internal scratch']
  %s0 = inlined_call_operand.vmem [shape: f32[4,8], index: 0, kind: input, shape index: {}]
  %s1 = inlined_call_operand.vmem [shape: f32[16,512], index: 1, kind: input, shape index: {}]
  %s2 = inlined_call_operand.vmem [shape: bf16[64,16], index: 2, kind: input, shape index: {}]
  %s3 = inlined_call_operand.vmem [shape: bf16[3,64,64], index: 3, kind: input, shape index: {}]
  %s4 = inlined_call_operand.vmem [shape: f32[5,64,1], index: 4, kind: input, shape index: {}]
  %s5 = inlined_call_operand.vmem [shape: f32[64,1], index: 5, kind: input, shape index: {}]
  %s6 = inlined_call_operand.hbm [shape: f32[1,512], index: 6, kind: output, shape index: {}]
  %s7 = sld [smem:[#allocation0]]
  $region84: #{tpu_custom_call.1} parent=0
    _
  %s9 = ssub.s32 1, %s7
  %s10 = scalar_select 0, %s9, %s7
  $region1: #{tpu_custom_call.1} parent=0
    #allocation2 [shape = 'u8[2048]{0}', space=smem, size = 0x800, scoped, tag = 'input window, operand 0, single buffered']
    #allocation3 [shape = 's32[2]{0}', space=sflag, size = 0x8, scoped, tag = 'scoped memory for tpu_custom_call.1']
    #allocation4 [shape = 's32[2]{0}', space=sflag, size = 0x8, scoped, tag = 'scoped memory for tpu_custom_call.1']
    #allocation5 [shape = 'u8[32768]{0}', space=vmem, size = 0x8000, scoped, tag = 'input window, operand 1']
    #allocation6 [shape = 'u8[2048]{0}', space=vmem, size = 0x800, scoped, tag = 'output window, operand 0']
    %11 = vsyncpa [#allocation4], 0
    %12 = vsyncpa [#allocation3], 0
    %s13 = scalar_lea.sflag [#allocation3], 1
    %14 = vsyncpa %s13, 0
    loop: start=0, step=1, limit=4
    $region2: #{tpu_custom_call.1} parent=1 // loop_pre_header
      _
    $region3: #{tpu_custom_call.1} parent=1 // loop_header
      %s16 = sphi 0, %s20
      %p17 = scmp.ge.s32.totalorder %s16, 4
      %s24 = sphi 0, %s24
      %s26 = sphi 0, %s24
      %s27 = sphi 0, %s26
      %s41 = sphi 0, %s27
      %s47 = sphi 0, %s49
      %s50 = sphi 0, %s47
      %s51 = sphi 0, %s50
      %s67 = sphi 0, %s51
      %s71 = sphi 0, %s71
      %s73 = sphi 0, %s71
      %s74 = sphi 0, %s73
      %s88 = sphi 0, %s74
      %s92 = sphi 0, %s92
      %s94 = sphi 0, %s92
      %s95 = sphi 0, %s94
      %s109 = sphi 0, %s95
      %s113 = sphi 0, %s113
      %s115 = sphi 0, %s113
      %s116 = sphi 0, %s115
      %s130 = sphi 0, %s116
      %s134 = sphi 0, %s134
      %s136 = sphi 0, %s134
      %s137 = sphi 0, %s136
      %s151 = sphi 0, %s137
      %s157 = sphi 0, %s159
      %s160 = sphi 0, %s157
      %s161 = sphi 0, %s160
      %s177 = sphi 0, %s161
    $region4: #{tpu_custom_call.1} parent=1 // loop_header_branch
      %19 = sbr.rel (%p17) target = $region8
    $region5: #{tpu_custom_call.1} parent=1 // loop_body
      %s21 = ssub.s32 %s16, 1
      %s22 = ssub.s32 %s16, 2
      %s23 = sadd.s32 %s16, 1
      %s25 = sadd.s32 %s24, 1
      %p28 = scmp.eq.s32.totalorder %s16, 1
      %p29 = scmp.ne.s32.totalorder %s24, %s26
      %p30 = scmp.eq.s32.totalorder %s16, 0
      %p31 = por %p29, %p30
      %p32 = scmp.ne.s32.totalorder %s24, %s26
      %p33 = scmp.eq.s32.totalorder %s21, 1
      %p34 = por %p32, %p33
      %p35 = scmp.ne.s32.totalorder %s26, %s27
      %p36 = scmp.eq.s32.totalorder %s21, 0
      %p37 = por %p35, %p36
      %p38 = scmp.ne.s32.totalorder %s26, %s27
      %p39 = scmp.eq.s32.totalorder %s22, 1
      %p40 = por %p38, %p39
      %p42 = scmp.ne.s32.totalorder %s27, %s41
      %p43 = scmp.eq.s32.totalorder %s22, 0
      %p44 = por %p42, %p43
      %s45 = ssub.s32 %s16, %s23
      %p46 = scmp.eq.s32.totalorder %s45, 0
      %s48 = sadd.s32 %s47, 1
      %s49 = scalar_select %p46, %s47, %s48
      %p52 = pneg %p46
      %p53 = scmp.eq.s32.totalorder %s16, 1
      %p54 = por %p52, %p53
      %p55 = scmp.ne.s32.totalorder %s47, %s50
      %p56 = scmp.eq.s32.totalorder %s16, 0
      %p57 = por %p55, %p56
      %p58 = scmp.ne.s32.totalorder %s47, %s50
      %p59 = scmp.eq.s32.totalorder %s21, 1
      %p60 = por %p58, %p59
      %p61 = scmp.ne.s32.totalorder %s50, %s51
      %p62 = scmp.eq.s32.totalorder %s21, 0
      %p63 = por %p61, %p62
      %p64 = scmp.ne.s32.totalorder %s50, %s51
      %p65 = scmp.eq.s32.totalorder %s22, 1
      %p66 = por %p64, %p65
      %p68 = scmp.ne.s32.totalorder %s51, %s67
      %p69 = scmp.eq.s32.totalorder %s22, 0
      %p70 = por %p68, %p69
      %s72 = sadd.s32 %s71, 1
      %p75 = scmp.eq.s32.totalorder %s16, 1
      %p76 = scmp.ne.s32.totalorder %s71, %s73
      %p77 = scmp.eq.s32.totalorder %s16, 0
      %p78 = por %p76, %p77
      %p79 = scmp.ne.s32.totalorder %s71, %s73
      %p80 = scmp.eq.s32.totalorder %s21, 1
      %p81 = por %p79, %p80
      %p82 = scmp.ne.s32.totalorder %s73, %s74
      %p83 = scmp.eq.s32.totalorder %s21, 0
      %p84 = por %p82, %p83
      %p85 = scmp.ne.s32.totalorder %s73, %s74
      %p86 = scmp.eq.s32.totalorder %s22, 1
      %p87 = por %p85, %p86
      %p89 = scmp.ne.s32.totalorder %s74, %s88
      %p90 = scmp.eq.s32.totalorder %s22, 0
      %p91 = por %p89, %p90
      %s93 = sadd.s32 %s92, 1
      %p96 = scmp.eq.s32.totalorder %s16, 1
      %p97 = scmp.ne.s32.totalorder %s92, %s94
      %p98 = scmp.eq.s32.totalorder %s16, 0
      %p99 = por %p97, %p98
      %p100 = scmp.ne.s32.totalorder %s92, %s94
      %p101 = scmp.eq.s32.totalorder %s21, 1
      %p102 = por %p100, %p101
      %p103 = scmp.ne.s32.totalorder %s94, %s95
      %p104 = scmp.eq.s32.totalorder %s21, 0
      %p105 = por %p103, %p104
      %p106 = scmp.ne.s32.totalorder %s94, %s95
      %p107 = scmp.eq.s32.totalorder %s22, 1
      %p108 = por %p106, %p107
      %p110 = scmp.ne.s32.totalorder %s95, %s109
      %p111 = scmp.eq.s32.totalorder %s22, 0
      %p112 = por %p110, %p111
      %s114 = sadd.s32 %s113, 1
      %p117 = scmp.eq.s32.totalorder %s16, 1
      %p118 = scmp.ne.s32.totalorder %s113, %s115
      %p119 = scmp.eq.s32.totalorder %s16, 0
      %p120 = por %p118, %p119
      %p121 = scmp.ne.s32.totalorder %s113, %s115
      %p122 = scmp.eq.s32.totalorder %s21, 1
      %p123 = por %p121, %p122
      %p124 = scmp.ne.s32.totalorder %s115, %s116
      %p125 = scmp.eq.s32.totalorder %s21, 0
      %p126 = por %p124, %p125
      %p127 = scmp.ne.s32.totalorder %s115, %s116
      %p128 = scmp.eq.s32.totalorder %s22, 1
      %p129 = por %p127, %p128
      %p131 = scmp.ne.s32.totalorder %s116, %s130
      %p132 = scmp.eq.s32.totalorder %s22, 0
      %p133 = por %p131, %p132
      %s135 = sadd.s32 %s134, 1
      %p138 = scmp.eq.s32.totalorder %s16, 1
      %p139 = scmp.ne.s32.totalorder %s134, %s136
      %p140 = scmp.eq.s32.totalorder %s16, 0
      %p141 = por %p139, %p140
      %p142 = scmp.ne.s32.totalorder %s134, %s136
      %p143 = scmp.eq.s32.totalorder %s21, 1
      %p144 = por %p142, %p143
      %p145 = scmp.ne.s32.totalorder %s136, %s137
      %p146 = scmp.eq.s32.totalorder %s21, 0
      %p147 = por %p145, %p146
      %p148 = scmp.ne.s32.totalorder %s136, %s137
      %p149 = scmp.eq.s32.totalorder %s22, 1
      %p150 = por %p148, %p149
      %p152 = scmp.ne.s32.totalorder %s137, %s151
      %p153 = scmp.eq.s32.totalorder %s22, 0
      %p154 = por %p152, %p153
      %s155 = ssub.s32 %s16, %s23
      %p156 = scmp.eq.s32.totalorder %s155, 0
      %s158 = sadd.s32 %s157, 1
      %s159 = scalar_select %p156, %s157, %s158
      %p162 = pneg %p156
      %p163 = scmp.eq.s32.totalorder %s16, 1
      %p164 = por %p162, %p163
      %p165 = scmp.ne.s32.totalorder %s157, %s160
      %p166 = scmp.eq.s32.totalorder %s16, 0
      %p167 = por %p165, %p166
      %p168 = scmp.ne.s32.totalorder %s157, %s160
      %p169 = scmp.eq.s32.totalorder %s21, 1
      %p170 = por %p168, %p169
      %p171 = scmp.ne.s32.totalorder %s160, %s161
      %p172 = scmp.eq.s32.totalorder %s21, 0
      %p173 = por %p171, %p172
      %p174 = scmp.ne.s32.totalorder %s160, %s161
      %p175 = scmp.eq.s32.totalorder %s22, 1
      %p176 = por %p174, %p175
      %p178 = scmp.ne.s32.totalorder %s161, %s177
      %p179 = scmp.eq.s32.totalorder %s22, 0
      %p180 = por %p178, %p179
      %p181 = scmp.le.s32.totalorder 1, %s16
      %p182 = scmp.lt.s32.totalorder %s16, 3
      %p183 = pnand %p181, %p182
      %p184 = pneg %p183
      // Predicated region
      $region9: #{tpu_custom_call.1} parent=5 // pred_check
        _
      $region10: #{tpu_custom_call.1} parent=5 // pred_check_branch
        %186 = sbr.rel (%p183) target = $region12
      $region11: #{tpu_custom_call.1} parent=5 // pred_region
        %s187 = ssub.s32 %s16, 1
        // Predicated region
        $region13: #{tpu_custom_call.1} parent=11 // pred_check
          %p188 = pneg %p37
        $region14: #{tpu_custom_call.1} parent=11 // pred_check_branch
          %190 = sbr.rel (%p188) target = $region16
        $region15: #{tpu_custom_call.1} parent=11 // pred_region
          %s192 = ssub.s32 64, 64
          %193 = vsyncadd [#allocation4], %s192
          %s195 = sshll.u32 %s0, 4
          %s196 = int_to_ptr.vmem [resolvable:$true] %s195
          %198 = dma.vmem_to_smem %s196, 64, [#allocation2], [#allocation4]
        $region16: #{tpu_custom_call.1} parent=11 // pred_fallthru
          _
        // Predicated region
        $region17: #{tpu_custom_call.1} parent=11 // pred_check
          %p199 = pneg %p84
        $region18: #{tpu_custom_call.1} parent=11 // pred_check_branch
          %201 = sbr.rel (%p199) target = $region20
        $region19: #{tpu_custom_call.1} parent=11 // pred_region
          _
        $region20: #{tpu_custom_call.1} parent=11 // pred_fallthru
          _
        // Predicated region
        $region21: #{tpu_custom_call.1} parent=11 // pred_check
          %p202 = pneg %p105
        $region22: #{tpu_custom_call.1} parent=11 // pred_check_branch
          %204 = sbr.rel (%p202) target = $region24
        $region23: #{tpu_custom_call.1} parent=11 // pred_region
          _
        $region24: #{tpu_custom_call.1} parent=11 // pred_fallthru
          _
        // Predicated region
        $region25: #{tpu_custom_call.1} parent=11 // pred_check
          %p205 = pneg %p126
        $region26: #{tpu_custom_call.1} parent=11 // pred_check_branch
          %207 = sbr.rel (%p205) target = $region28
        $region27: #{tpu_custom_call.1} parent=11 // pred_region
          _
        $region28: #{tpu_custom_call.1} parent=11 // pred_fallthru
          _
        // Predicated region
        $region29: #{tpu_custom_call.1} parent=11 // pred_check
          %p208 = pneg %p147
        $region30: #{tpu_custom_call.1} parent=11 // pred_check_branch
          %210 = sbr.rel (%p208) target = $region32
        $region31: #{tpu_custom_call.1} parent=11 // pred_region
          _
        $region32: #{tpu_custom_call.1} parent=11 // pred_fallthru
          _
      $region12: #{tpu_custom_call.1} parent=5 // pred_fallthru
        _
      %p211 = scmp.lt.s32.totalorder %s16, 2
      // Predicated region
      $region33: #{tpu_custom_call.1} parent=5 // pred_check
        %p212 = pneg %p211
      $region34: #{tpu_custom_call.1} parent=5 // pred_check_branch
        %214 = sbr.rel (%p212) target = $region36
      $region35: #{tpu_custom_call.1} parent=5 // pred_region
        // Predicated region
        $region37: #{tpu_custom_call.1} parent=35 // pred_check
          %p215 = pneg %p57
        $region38: #{tpu_custom_call.1} parent=35 // pred_check_branch
          %217 = sbr.rel (%p215) target = $region40
        $region39: #{tpu_custom_call.1} parent=35 // pred_region
          %s218 = sand.u32 %s47, 1
          %s219 = sand.u32 %s47, 1
          %s220 = smul.addr %s219, 32
          %s221 = scalar_lea.vmem [#allocation5], %s220
          %s222 = smul.u32 2, %s16
          %s223 = smul.addr %s222, 8
          %s224 = scalar_lea.vmem %s1, %s223
          // Predicated region
          $region41: #{tpu_custom_call.1} parent=39 // pred_check
            _
          $region42: #{tpu_custom_call.1} parent=39 // pred_check_branch
            %226 = sbr.rel (0) target = $region44
          $region43: #{tpu_custom_call.1} parent=39 // pred_region
            // Predicated region
            $region45: #{tpu_custom_call.1} parent=43 // pred_check
              _
            $region46: #{tpu_custom_call.1} parent=43 // pred_check_branch
              %228 = sbr.rel (0) target = $region48
            $region47: #{tpu_custom_call.1} parent=43 // pred_region
              loop: start=0, step=1, limit=1
              $region49: #{tpu_custom_call.1} parent=47 // loop_pre_header
                _
              $region50: #{tpu_custom_call.1} parent=47 // loop_header
                %s230 = sphi 0, %s234
                %p231 = scmp.ge.s32.totalorder %s230, 1
                %s235 = sphi %s224, %s224
                %s236 = sphi %s221, %s221
              $region51: #{tpu_custom_call.1} parent=47 // loop_header_branch
                %233 = sbr.rel (%p231) target = $region55
              $region52: #{tpu_custom_call.1} parent=47 // loop_body
                %v237 = vld [vmem:[%s235] sm:$0xff]
                %238 = vst [vmem:[%s236] sm:$0xff] %v237
                %v239 = vld [vmem:[%s235 + $0x8] sm:$0xff]
                %240 = vst [vmem:[%s236 + $0x8] sm:$0xff] %v239
                %v241 = vld [vmem:[%s235 + $0x20] sm:$0xff]
                %242 = vst [vmem:[%s236 + $0x10] sm:$0xff] %v241
                %v243 = vld [vmem:[%s235 + $0x28] sm:$0xff]
                %244 = vst [vmem:[%s236 + $0x18] sm:$0xff] %v243
              $region53: #{tpu_custom_call.1} parent=47 // loop_footer
                %s234 = sadd.s32 1, %s230
              $region54: #{tpu_custom_call.1} parent=47 // loop_footer_branch
                %229 = sbr.rel target = $region50
              $region55: #{tpu_custom_call.1} parent=47 // loop_exit
                _
            $region48: #{tpu_custom_call.1} parent=43 // pred_fallthru
              _
            // Predicated region
            $region56: #{tpu_custom_call.1} parent=43 // pred_check
              _
            $region57: #{tpu_custom_call.1} parent=43 // pred_check_branch
              %246 = sbr.rel target = $region59
            $region58: #{tpu_custom_call.1} parent=43 // pred_region
              _
            $region59: #{tpu_custom_call.1} parent=43 // pred_fallthru
              _
          $region44: #{tpu_custom_call.1} parent=39 // pred_fallthru
            _
          %247 = vnop
        $region40: #{tpu_custom_call.1} parent=35 // pred_fallthru
          _
      $region36: #{tpu_custom_call.1} parent=5 // pred_fallthru
        _
      %p248 = scmp.le.s32.totalorder 1, %s16
      %p249 = scmp.lt.s32.totalorder %s16, 3
      %p250 = pnand %p248, %p249
      %p251 = pneg %p250
      // Predicated region
      $region60: #{tpu_custom_call.1} parent=5 // pred_check
        _
      $region61: #{tpu_custom_call.1} parent=5 // pred_check_branch
        %253 = sbr.rel (%p250) target = $region63
      $region62: #{tpu_custom_call.1} parent=5 // pred_region
        %s254 = ssub.s32 %s16, 1
        // Predicated region
        $region64: #{tpu_custom_call.1} parent=62 // pred_check
          %p255 = pneg %p37
        $region65: #{tpu_custom_call.1} parent=62 // pred_check_branch
          %257 = sbr.rel (%p255) target = $region67
        $region66: #{tpu_custom_call.1} parent=62 // pred_region
          %258 = dma.done [#allocation4], 64
        $region67: #{tpu_custom_call.1} parent=62 // pred_fallthru
          _
        %s259 = sand.u32 %s50, 1
        %s260 = sand.u32 %s50, 1
        %s261 = smul.addr %s260, 32
        %s262 = scalar_lea.vmem [#allocation5], %s261
        // Predicated region
        $region68: #{tpu_custom_call.1} parent=62 // pred_check
          %p263 = pneg %p63
        $region69: #{tpu_custom_call.1} parent=62 // pred_check_branch
          %265 = sbr.rel (%p263) target = $region71
        $region70: #{tpu_custom_call.1} parent=62 // pred_region
          _
        $region71: #{tpu_custom_call.1} parent=62 // pred_fallthru
          _
        %266 = sfence
        %p267 = pneg %p37
        %p268 = pneg %p34
        %s269 = sand.u32 %s50, 1
        %s270 = sand.u32 %s50, 1
        %s271 = smul.addr %s270, 32
        %s272 = scalar_lea.vmem [#allocation5], %s271
        %p273 = pneg %p63
        %p274 = pneg %p60
        %p275 = pneg %p84
        %p276 = pneg %p81
        %p277 = pneg %p105
        %p278 = pneg %p102
        %p279 = pneg %p126
        %p280 = pneg %p123
        %p281 = pneg %p147
        %p282 = pneg %p144
        %p283 = pneg %p173
        %p284 = pneg %p170
        %s285 = sand.u32 %s160, 1
        %s286 = scalar_lea.sflag [#allocation3], %s285
        %s287 = sand.u32 %s160, 1
        %s288 = smul.addr %s287, 2
        %s289 = scalar_lea.vmem [#allocation6], %s288
        %s290 = smul.u32 2, %s21
        %s291 = smul.u32 2, %s21
        %s293 = sld [smem:[#allocation2]]
        %s294 = sld [smem:[#allocation2 + $0x2]]
        %s295 = sld [smem:[#allocation2 + $0x3]]
        %s296 = sld [smem:[#allocation2 + $0x4]]
        %s297 = sld [smem:[#allocation2 + $0x5]]
        %s298 = sld [smem:[#allocation2 + $0x6]]
        %s299 = sld [smem:[#allocation2 + $0x7]]
        %s300 = sld [smem:[#allocation2 + $0x80]]
        %s301 = sld [smem:[#allocation2 + $0x82]]
        %s302 = sld [smem:[#allocation2 + $0x83]]
        %s303 = sld [smem:[#allocation2 + $0x84]]
        %s304 = sld [smem:[#allocation2 + $0x85]]
        %s305 = sld [smem:[#allocation2 + $0x86]]
        %s306 = sld [smem:[#allocation2 + $0x87]]
        %s307 = sld [smem:[#allocation2 + $0x100]]
        %s308 = sld [smem:[#allocation2 + $0x102]]
        %s309 = sld [smem:[#allocation2 + $0x103]]
        %s310 = sld [smem:[#allocation2 + $0x104]]
        %s311 = sld [smem:[#allocation2 + $0x105]]
        %s312 = sld [smem:[#allocation2 + $0x106]]
        %s313 = sld [smem:[#allocation2 + $0x107]]
        %s314 = sld [smem:[#allocation2 + $0x180]]
        %s315 = sld [smem:[#allocation2 + $0x182]]
        %s316 = sld [smem:[#allocation2 + $0x183]]
        %s317 = sld [smem:[#allocation2 + $0x184]]
        %s318 = sld [smem:[#allocation2 + $0x185]]
        %s319 = sld [smem:[#allocation2 + $0x186]]
        %s320 = sld [smem:[#allocation2 + $0x187]]
        %v321 = vld [vmem:[%s262] sm:$0xff]
        %v322 = vld [vmem:[%s262 + $0x8] sm:$0xff]
        %v323 = vld [vmem:[%s262 + $0x10] sm:$0xff]
        %v324 = vld [vmem:[%s262 + $0x18] sm:$0xff]
        %v325 = vpack.c.bf16 %v323, %v321
        %v326 = vpack.c.bf16 %v324, %v322
        %v327 = vld [vmem:[%s2] sm:$0xf]
        %v328 = vld [vmem:[%s2 + $0x4] sm:$0xf]
        %v329 = vld [vmem:[%s2 + $0x8] sm:$0xf]
        %v330 = vld [vmem:[%s2 + $0xc] sm:$0xf]
        %v331 = vld [vmem:[%s2 + $0x10] sm:$0xf]
        %v332 = vld [vmem:[%s2 + $0x14] sm:$0xf]
        %v333 = vld [vmem:[%s2 + $0x18] sm:$0xf]
        %v334 = vld [vmem:[%s2 + $0x1c] sm:$0xf]
        %v335 = vld [vmem:[%s4] sm:$0xff]
        %v336 = vld [vmem:[%s4 + $0x8] sm:$0xff]
        %v337 = vld [vmem:[%s4 + $0x10] sm:$0xff]
        %v338 = vld [vmem:[%s4 + $0x18] sm:$0xff]
        %v339 = vld [vmem:[%s4 + $0x20] sm:$0xff]
        %v340 = vld [vmem:[%s4 + $0x28] sm:$0xff]
        %v341 = vld [vmem:[%s4 + $0x30] sm:$0xff]
        %v342 = vld [vmem:[%s4 + $0x38] sm:$0xff]
        %344 = vset.pattern.permute.xlu0 0
        %345 = vperm.xlu0 %344, %v335
        %v346 = vpop.permute.xlu0 %345
        %349 = vset.pattern.permute.xlu0 0
        %350 = vperm.xlu0 %349, %v336
        %v351 = vpop.permute.xlu0 %350
        %354 = vset.pattern.permute.xlu0 0
        %355 = vperm.xlu0 %354, %v337
        %v356 = vpop.permute.xlu0 %355
        %359 = vset.pattern.permute.xlu0 0
        %360 = vperm.xlu0 %359, %v338
        %v361 = vpop.permute.xlu0 %360
        %364 = vset.pattern.permute.xlu0 0
        %365 = vperm.xlu0 %364, %v339
        %v366 = vpop.permute.xlu0 %365
        %369 = vset.pattern.permute.xlu0 0
        %370 = vperm.xlu0 %369, %v340
        %v371 = vpop.permute.xlu0 %370
        %374 = vset.pattern.permute.xlu0 0
        %375 = vperm.xlu0 %374, %v341
        %v376 = vpop.permute.xlu0 %375
        %379 = vset.pattern.permute.xlu0 0
        %380 = vperm.xlu0 %379, %v342
        %v381 = vpop.permute.xlu0 %380
        %v391 = vunpack.c.l.b16 %v327
        %v392 = vunpack.c.l.b16 %v328
        %v393 = vunpack.c.l.b16 %v329
        %v394 = vunpack.c.l.b16 %v330
        %v395 = vunpack.c.l.b16 %v331
        %v396 = vunpack.c.l.b16 %v332
        %v397 = vunpack.c.l.b16 %v333
        %v398 = vunpack.c.l.b16 %v334
        %v399 = vpack.c.b16 %v392, %v391
        %v400 = vpack.c.b16 %v394, %v393
        %v401 = vpack.c.b16 %v396, %v395
        %v402 = vpack.c.b16 %v398, %v397
        %vm403 = vcmask 130048
        %v405 = vsel %vm403, %v399, 0
        %v408 = vsel %vm403, %v400, 0
        %v411 = vsel %vm403, %v401, 0
        %v414 = vsel %vm403, %v402, 0
        %416 = vmatprep.subr.bf16.mxu0 %v326
        %417 = vmatpush1.bf16.msra.mxu0 %v325
        %418 = vmatprep.subr.bf16.mxu0 0
        %419 = vmatpush1.bf16.msra.mxu0 0
        %420 = vmatprep.subr.bf16.mxu0 0
        %421 = vmatpush1.bf16.msra.mxu0 0
        %422 = vmatprep.subr.bf16.mxu0 0
        %423 = vmatpush1.bf16.msra.mxu0 0
        %424 = vmatprep.subr.bf16.mxu0 0
        %425 = vmatpush1.bf16.msra.mxu0 0
        %426 = vmatprep.subr.bf16.mxu0 0
        %427 = vmatpush1.bf16.msra.mxu0 0
        %428 = vmatprep.subr.bf16.mxu0 0
        %429 = vmatpush1.bf16.msra.mxu0 0
        %430 = vmatprep.subr.bf16.mxu0 0
        %431 = vmatpush1.bf16.msra.mxu0 0
        %432 = vmatprep.subr.bf16.mxu0 0
        %433 = vmatpush1.bf16.msra.mxu0 0
        %434 = vmatprep.subr.bf16.mxu0 0
        %435 = vmatpush1.bf16.msra.mxu0 0
        %436 = vmatprep.subr.bf16.mxu0 0
        %437 = vmatpush1.bf16.msra.mxu0 0
        %438 = vmatprep.subr.bf16.mxu0 0
        %439 = vmatpush1.bf16.msra.mxu0 0
        %440 = vmatprep.subr.bf16.mxu0 0
        %441 = vmatpush1.bf16.msra.mxu0 0
        %442 = vmatprep.subr.bf16.mxu0 0
        %443 = vmatpush1.bf16.msra.mxu0 0
        %444 = vmatprep.subr.bf16.mxu0 0
        %445 = vmatpush1.bf16.msra.mxu0 0
        %446 = vmatprep.subr.bf16.mxu0 0
        %447 = vmatpush1.bf16.msra.mxu0 0
        %448 = vmatprep.mubr.bf16.mxu0 0
        %449 = vmatmul.mubr.bf16.gmra.mrb[0].mxu0 %v405
        %v450 = vpop.f32.mrb[0].mxu0
        %v451 = vadd.f32 %v346, %v450
        %v452 = vpop.f32.mrb[0].mxu0
        %v453 = vadd.f32 %v346, %v452
        %v454 = vpop.f32.mrb[0].mxu0
        %v455 = vadd.f32 %v351, %v454
        %v456 = vpop.f32.mrb[0].mxu0
        %v457 = vadd.f32 %v351, %v456
        %458 = vmatprep.mubr.bf16.mxu0 0
        %459 = vmatmul.mubr.bf16.gmra.mrb[0].mxu0 %v408
        %v460 = vpop.f32.mrb[0].mxu0
        %v461 = vadd.f32 %v356, %v460
        %v462 = vpop.f32.mrb[0].mxu0
        %v463 = vadd.f32 %v356, %v462
        %v464 = vpop.f32.mrb[0].mxu0
        %v465 = vadd.f32 %v361, %v464
        %v466 = vpop.f32.mrb[0].mxu0
        %v467 = vadd.f32 %v361, %v466
        %468 = vmatprep.mubr.bf16.mxu0 0
        %469 = vmatmul.mubr.bf16.gmra.mrb[0].mxu0 %v411
        %v470 = vpop.f32.mrb[0].mxu0
        %v471 = vadd.f32 %v366, %v470
        %v472 = vpop.f32.mrb[0].mxu0
        %v473 = vadd.f32 %v366, %v472
        %v474 = vpop.f32.mrb[0].mxu0
        %v475 = vadd.f32 %v371, %v474
        %v476 = vpop.f32.mrb[0].mxu0
        %v477 = vadd.f32 %v371, %v476
        %478 = vmatprep.mubr.bf16.mxu0 0
        %479 = vmatmul.mubr.bf16.gmra.mrb[0].mxu0 %v414
        %v480 = vpop.f32.mrb[0].mxu0
        %v481 = vadd.f32 %v376, %v480
        %v482 = vpop.f32.mrb[0].mxu0
        %v483 = vadd.f32 %v376, %v482
        %v484 = vpop.f32.mrb[0].mxu0
        %v485 = vadd.f32 %v381, %v484
        %v486 = vpop.f32.mrb[0].mxu0
        %v487 = vadd.f32 %v381, %v486
        %488 = vdwg.mxu0
        %v489 = vmul.f32 %v451, %v451
        %v490 = vmul.f32 %v453, %v453
        %v491 = vmul.f32 %v455, %v455
        %v492 = vmul.f32 %v457, %v457
        %v493 = vmul.f32 %v461, %v461
        %v494 = vmul.f32 %v463, %v463
        %v495 = vmul.f32 %v465, %v465
        %v496 = vmul.f32 %v467, %v467
        %v497 = vmul.f32 %v471, %v471
        %v498 = vmul.f32 %v473, %v473
        %v499 = vmul.f32 %v475, %v475
        %v500 = vmul.f32 %v477, %v477
        %v501 = vmul.f32 %v481, %v481
        %v502 = vmul.f32 %v483, %v483
        %v503 = vmul.f32 %v485, %v485
        %v504 = vmul.f32 %v487, %v487
        %v505 = vstv %s295
        %v506 = vmul.f32 %v505, %v489
        %v507 = vmul.f32 %v505, %v490
        %v508 = vmul.f32 %v505, %v491
        %v509 = vmul.f32 %v505, %v492
        %v510 = vmul.f32 %v505, %v493
        %v511 = vmul.f32 %v505, %v494
        %v512 = vmul.f32 %v505, %v495
        %v513 = vmul.f32 %v505, %v496
        %v514 = vmul.f32 %v505, %v497
        %v515 = vmul.f32 %v505, %v498
        %v516 = vmul.f32 %v505, %v499
        %v517 = vmul.f32 %v505, %v500
        %v518 = vmul.f32 %v505, %v501
        %v519 = vmul.f32 %v505, %v502
        %v520 = vmul.f32 %v505, %v503
        %v521 = vmul.f32 %v505, %v504
        %v522 = vstv %s297
        %v523 = vmul.f32 %v522, %v451
        %v524 = vmul.f32 %v522, %v453
        %v525 = vmul.f32 %v522, %v455
        %v526 = vmul.f32 %v522, %v457
        %v527 = vmul.f32 %v522, %v461
        %v528 = vmul.f32 %v522, %v463
        %v529 = vmul.f32 %v522, %v465
        %v530 = vmul.f32 %v522, %v467
        %v531 = vmul.f32 %v522, %v471
        %v532 = vmul.f32 %v522, %v473
        %v533 = vmul.f32 %v522, %v475
        %v534 = vmul.f32 %v522, %v477
        %v535 = vmul.f32 %v522, %v481
        %v536 = vmul.f32 %v522, %v483
        %v537 = vmul.f32 %v522, %v485
        %v538 = vmul.f32 %v522, %v487
        %v539 = vstv %s299
        %v540 = vadd.f32 %v523, %v539
        %v541 = vadd.f32 %v524, %v539
        %v542 = vadd.f32 %v525, %v539
        %v543 = vadd.f32 %v526, %v539
        %v544 = vadd.f32 %v527, %v539
        %v545 = vadd.f32 %v528, %v539
        %v546 = vadd.f32 %v529, %v539
        %v547 = vadd.f32 %v530, %v539
        %v548 = vadd.f32 %v531, %v539
        %v549 = vadd.f32 %v532, %v539
        %v550 = vadd.f32 %v533, %v539
        %v551 = vadd.f32 %v534, %v539
        %v552 = vadd.f32 %v535, %v539
        %v553 = vadd.f32 %v536, %v539
        %v554 = vadd.f32 %v537, %v539
        %v555 = vadd.f32 %v538, %v539
        %v556 = vadd.f32 %v506, %v540
        %v557 = vadd.f32 %v507, %v541
        %v558 = vadd.f32 %v508, %v542
        %v559 = vadd.f32 %v509, %v543
        %v560 = vadd.f32 %v510, %v544
        %v561 = vadd.f32 %v511, %v545
        %v562 = vadd.f32 %v512, %v546
        %v563 = vadd.f32 %v513, %v547
        %v564 = vadd.f32 %v514, %v548
        %v565 = vadd.f32 %v515, %v549
        %v566 = vadd.f32 %v516, %v550
        %v567 = vadd.f32 %v517, %v551
        %v568 = vadd.f32 %v518, %v552
        %v569 = vadd.f32 %v519, %v553
        %v570 = vadd.f32 %v520, %v554
        %v571 = vadd.f32 %v521, %v555
        %v572 = vrcp.pop %v556
        %v573 = vrcp.pop %v557
        %v574 = vrcp.pop %v558
        %v575 = vrcp.pop %v559
        %v576 = vrcp.pop %v560
        %v577 = vrcp.pop %v561
        %v578 = vrcp.pop %v562
        %v579 = vrcp.pop %v563
        %v580 = vrcp.pop %v564
        %v581 = vrcp.pop %v565
        %v582 = vrcp.pop %v566
        %v583 = vrcp.pop %v567
        %v584 = vrcp.pop %v568
        %v585 = vrcp.pop %v569
        %v586 = vrcp.pop %v570
        %v587 = vrcp.pop %v571
        %v588 = vstv %s293
        %v589 = vmul.f32 %v588, %v451
        %v590 = vmul.f32 %v588, %v453
        %v591 = vmul.f32 %v588, %v455
        %v592 = vmul.f32 %v588, %v457
        %v593 = vmul.f32 %v588, %v461
        %v594 = vmul.f32 %v588, %v463
        %v595 = vmul.f32 %v588, %v465
        %v596 = vmul.f32 %v588, %v467
        %v597 = vmul.f32 %v588, %v471
        %v598 = vmul.f32 %v588, %v473
        %v599 = vmul.f32 %v588, %v475
        %v600 = vmul.f32 %v588, %v477
        %v601 = vmul.f32 %v588, %v481
        %v602 = vmul.f32 %v588, %v483
        %v603 = vmul.f32 %v588, %v485
        %v604 = vmul.f32 %v588, %v487
        %v605 = vstv %s294
        %v606 = vadd.f32 %v589, %v605
        %v607 = vadd.f32 %v590, %v605
        %v608 = vadd.f32 %v591, %v605
        %v609 = vadd.f32 %v592, %v605
        %v610 = vadd.f32 %v593, %v605
        %v611 = vadd.f32 %v594, %v605
        %v612 = vadd.f32 %v595, %v605
        %v613 = vadd.f32 %v596, %v605
        %v614 = vadd.f32 %v597, %v605
        %v615 = vadd.f32 %v598, %v605
        %v616 = vadd.f32 %v599, %v605
        %v617 = vadd.f32 %v600, %v605
        %v618 = vadd.f32 %v601, %v605
        %v619 = vadd.f32 %v602, %v605
        %v620 = vadd.f32 %v603, %v605
        %v621 = vadd.f32 %v604, %v605
        %v622 = vmul.f32 %v606, %v489
        %v623 = vmul.f32 %v607, %v490
        %v624 = vmul.f32 %v608, %v491
        %v625 = vmul.f32 %v609, %v492
        %v626 = vmul.f32 %v610, %v493
        %v627 = vmul.f32 %v611, %v494
        %v628 = vmul.f32 %v612, %v495
        %v629 = vmul.f32 %v613, %v496
        %v630 = vmul.f32 %v614, %v497
        %v631 = vmul.f32 %v615, %v498
        %v632 = vmul.f32 %v616, %v499
        %v633 = vmul.f32 %v617, %v500
        %v634 = vmul.f32 %v618, %v501
        %v635 = vmul.f32 %v619, %v502
        %v636 = vmul.f32 %v620, %v503
        %v637 = vmul.f32 %v621, %v504
        %v638 = vstv %s296
        %v639 = vmul.f32 %v638, %v451
        %v640 = vmul.f32 %v638, %v453
        %v641 = vmul.f32 %v638, %v455
        %v642 = vmul.f32 %v638, %v457
        %v643 = vmul.f32 %v638, %v461
        %v644 = vmul.f32 %v638, %v463
        %v645 = vmul.f32 %v638, %v465
        %v646 = vmul.f32 %v638, %v467
        %v647 = vmul.f32 %v638, %v471
        %v648 = vmul.f32 %v638, %v473
        %v649 = vmul.f32 %v638, %v475
        %v650 = vmul.f32 %v638, %v477
        %v651 = vmul.f32 %v638, %v481
        %v652 = vmul.f32 %v638, %v483
        %v653 = vmul.f32 %v638, %v485
        %v654 = vmul.f32 %v638, %v487
        %v655 = vstv %s298
        %v656 = vadd.f32 %v639, %v655
        %v657 = vadd.f32 %v640, %v655
        %v658 = vadd.f32 %v641, %v655
        %v659 = vadd.f32 %v642, %v655
        %v660 = vadd.f32 %v643, %v655
        %v661 = vadd.f32 %v644, %v655
        %v662 = vadd.f32 %v645, %v655
        %v663 = vadd.f32 %v646, %v655
        %v664 = vadd.f32 %v647, %v655
        %v665 = vadd.f32 %v648, %v655
        %v666 = vadd.f32 %v649, %v655
        %v667 = vadd.f32 %v650, %v655
        %v668 = vadd.f32 %v651, %v655
        %v669 = vadd.f32 %v652, %v655
        %v670 = vadd.f32 %v653, %v655
        %v671 = vadd.f32 %v654, %v655
        %v672 = vadd.f32 %v622, %v656
        %v673 = vadd.f32 %v623, %v657
        %v674 = vadd.f32 %v624, %v658
        %v675 = vadd.f32 %v625, %v659
        %v676 = vadd.f32 %v626, %v660
        %v677 = vadd.f32 %v627, %v661
        %v678 = vadd.f32 %v628, %v662
        %v679 = vadd.f32 %v629, %v663
        %v680 = vadd.f32 %v630, %v664
        %v681 = vadd.f32 %v631, %v665
        %v682 = vadd.f32 %v632, %v666
        %v683 = vadd.f32 %v633, %v667
        %v684 = vadd.f32 %v634, %v668
        %v685 = vadd.f32 %v635, %v669
        %v686 = vadd.f32 %v636, %v670
        %v687 = vadd.f32 %v637, %v671
        %v688 = vmul.f32 %v672, %v572
        %v689 = vmul.f32 %v673, %v573
        %v690 = vmul.f32 %v674, %v574
        %v691 = vmul.f32 %v675, %v575
        %v692 = vmul.f32 %v676, %v576
        %v693 = vmul.f32 %v677, %v577
        %v694 = vmul.f32 %v678, %v578
        %v695 = vmul.f32 %v679, %v579
        %v696 = vmul.f32 %v680, %v580
        %v697 = vmul.f32 %v681, %v581
        %v698 = vmul.f32 %v682, %v582
        %v699 = vmul.f32 %v683, %v583
        %v700 = vmul.f32 %v684, %v584
        %v701 = vmul.f32 %v685, %v585
        %v702 = vmul.f32 %v686, %v586
        %v703 = vmul.f32 %v687, %v587
        %v704 = vld [vmem:[%s3] sm:$0xf]
        %v705 = vld [vmem:[%s3 + $0x4] sm:$0xf]
        %v706 = vld [vmem:[%s3 + $0x8] sm:$0xf]
        %v707 = vld [vmem:[%s3 + $0xc] sm:$0xf]
        %v708 = vld [vmem:[%s3 + $0x10] sm:$0xf]
        %v709 = vld [vmem:[%s3 + $0x14] sm:$0xf]
        %v710 = vld [vmem:[%s3 + $0x18] sm:$0xf]
        %v711 = vld [vmem:[%s3 + $0x1c] sm:$0xf]
        %v712 = vpack.c.bf16 %v690, %v688
        %v713 = vpack.c.bf16 %v691, %v689
        %v714 = vpack.c.bf16 %v694, %v692
        %v715 = vpack.c.bf16 %v695, %v693
        %v716 = vpack.c.bf16 %v698, %v696
        %v717 = vpack.c.bf16 %v699, %v697
        %v718 = vpack.c.bf16 %v702, %v700
        %v719 = vpack.c.bf16 %v703, %v701
        %s720 = scalar_lea.vmem %s4, 64
        %v721 = vld [vmem:[%s720] sm:$0xff]
        %v722 = vld [vmem:[%s720 + $0x8] sm:$0xff]
        %v723 = vld [vmem:[%s720 + $0x10] sm:$0xff]
        %v724 = vld [vmem:[%s720 + $0x18] sm:$0xff]
        %v725 = vld [vmem:[%s720 + $0x20] sm:$0xff]
        %v726 = vld [vmem:[%s720 + $0x28] sm:$0xff]
        %v727 = vld [vmem:[%s720 + $0x30] sm:$0xff]
        %v728 = vld [vmem:[%s720 + $0x38] sm:$0xff]
        %730 = vset.pattern.permute.xlu0 0
        %731 = vperm.xlu0 %730, %v721
        %v732 = vpop.permute.xlu0 %731
        %735 = vset.pattern.permute.xlu0 0
        %736 = vperm.xlu0 %735, %v722
        %v737 = vpop.permute.xlu0 %736
        %740 = vset.pattern.permute.xlu0 0
        %741 = vperm.xlu0 %740, %v723
        %v742 = vpop.permute.xlu0 %741
        %745 = vset.pattern.permute.xlu0 0
        %746 = vperm.xlu0 %745, %v724
        %v747 = vpop.permute.xlu0 %746
        %750 = vset.pattern.permute.xlu0 0
        %751 = vperm.xlu0 %750, %v725
        %v752 = vpop.permute.xlu0 %751
        %755 = vset.pattern.permute.xlu0 0
        %756 = vperm.xlu0 %755, %v726
        %v757 = vpop.permute.xlu0 %756
        %760 = vset.pattern.permute.xlu0 0
        %761 = vperm.xlu0 %760, %v727
        %v762 = vpop.permute.xlu0 %761
        %765 = vset.pattern.permute.xlu0 0
        %766 = vperm.xlu0 %765, %v728
        %v767 = vpop.permute.xlu0 %766
        %v777 = vunpack.c.l.b16 %v704
        %v778 = vunpack.c.l.b16 %v705
        %v779 = vunpack.c.l.b16 %v706
        %v780 = vunpack.c.l.b16 %v707
        %v781 = vunpack.c.l.b16 %v708
        %v782 = vunpack.c.l.b16 %v709
        %v783 = vunpack.c.l.b16 %v710
        %v784 = vunpack.c.l.b16 %v711
        %v785 = vpack.c.b16 %v778, %v777
        %v786 = vpack.c.b16 %v780, %v779
        %v787 = vpack.c.b16 %v782, %v781
        %v788 = vpack.c.b16 %v784, %v783
        %vm789 = vcmask 523264
        %v791 = vsel %vm789, %v785, 0
        %v794 = vsel %vm789, %v786, 0
        %v797 = vsel %vm789, %v787, 0
        %v800 = vsel %vm789, %v788, 0
        %802 = vmatprep.subr.bf16.mxu0 %v713
        %803 = vmatpush1.bf16.msra.mxu0 %v712
        %804 = vmatprep.subr.bf16.mxu0 %v715
        %805 = vmatpush1.bf16.msra.mxu0 %v714
        %806 = vmatprep.subr.bf16.mxu0 %v717
        %807 = vmatpush1.bf16.msra.mxu0 %v716
        %808 = vmatprep.subr.bf16.mxu0 %v719
        %809 = vmatpush1.bf16.msra.mxu0 %v718
        %810 = vmatprep.subr.bf16.mxu0 0
        %811 = vmatpush1.bf16.msra.mxu0 0
        %812 = vmatprep.subr.bf16.mxu0 0
        %813 = vmatpush1.bf16.msra.mxu0 0
        %814 = vmatprep.subr.bf16.mxu0 0
        %815 = vmatpush1.bf16.msra.mxu0 0
        %816 = vmatprep.subr.bf16.mxu0 0
        %817 = vmatpush1.bf16.msra.mxu0 0
        %818 = vmatprep.subr.bf16.mxu0 0
        %819 = vmatpush1.bf16.msra.mxu0 0
        %820 = vmatprep.subr.bf16.mxu0 0
        %821 = vmatpush1.bf16.msra.mxu0 0
        %822 = vmatprep.subr.bf16.mxu0 0
        %823 = vmatpush1.bf16.msra.mxu0 0
        %824 = vmatprep.subr.bf16.mxu0 0
        %825 = vmatpush1.bf16.msra.mxu0 0
        %826 = vmatprep.subr.bf16.mxu0 0
        %827 = vmatpush1.bf16.msra.mxu0 0
        %828 = vmatprep.subr.bf16.mxu0 0
        %829 = vmatpush1.bf16.msra.mxu0 0
        %830 = vmatprep.subr.bf16.mxu0 0
        %831 = vmatpush1.bf16.msra.mxu0 0
        %832 = vmatprep.subr.bf16.mxu0 0
        %833 = vmatpush1.bf16.msra.mxu0 0
        %834 = vmatprep.mubr.bf16.mxu0 0
        %835 = vmatmul.mubr.bf16.gmra.mrb[0].mxu0 %v791
        %v836 = vpop.f32.mrb[0].mxu0
        %v837 = vadd.f32 %v732, %v836
        %v838 = vpop.f32.mrb[0].mxu0
        %v839 = vadd.f32 %v732, %v838
        %v840 = vpop.f32.mrb[0].mxu0
        %v841 = vadd.f32 %v737, %v840
        %v842 = vpop.f32.mrb[0].mxu0
        %v843 = vadd.f32 %v737, %v842
        %844 = vmatprep.mubr.bf16.mxu0 0
        %845 = vmatmul.mubr.bf16.gmra.mrb[0].mxu0 %v794
        %v846 = vpop.f32.mrb[0].mxu0
        %v847 = vadd.f32 %v742, %v846
        %v848 = vpop.f32.mrb[0].mxu0
        %v849 = vadd.f32 %v742, %v848
        %v850 = vpop.f32.mrb[0].mxu0
        %v851 = vadd.f32 %v747, %v850
        %v852 = vpop.f32.mrb[0].mxu0
        %v853 = vadd.f32 %v747, %v852
        %854 = vmatprep.mubr.bf16.mxu0 0
        %855 = vmatmul.mubr.bf16.gmra.mrb[0].mxu0 %v797
        %v856 = vpop.f32.mrb[0].mxu0
        %v857 = vadd.f32 %v752, %v856
        %v858 = vpop.f32.mrb[0].mxu0
        %v859 = vadd.f32 %v752, %v858
        %v860 = vpop.f32.mrb[0].mxu0
        %v861 = vadd.f32 %v757, %v860
        %v862 = vpop.f32.mrb[0].mxu0
        %v863 = vadd.f32 %v757, %v862
        %864 = vmatprep.mubr.bf16.mxu0 0
        %865 = vmatmul.mubr.bf16.gmra.mrb[0].mxu0 %v800
        %v866 = vpop.f32.mrb[0].mxu0
        %v867 = vadd.f32 %v762, %v866
        %v868 = vpop.f32.mrb[0].mxu0
        %v869 = vadd.f32 %v762, %v868
        %v870 = vpop.f32.mrb[0].mxu0
        %v871 = vadd.f32 %v767, %v870
        %v872 = vpop.f32.mrb[0].mxu0
        %v873 = vadd.f32 %v767, %v872
        %874 = vdwg.mxu0
        %v875 = vmul.f32 %v837, %v837
        %v876 = vmul.f32 %v839, %v839
        %v877 = vmul.f32 %v841, %v841
        %v878 = vmul.f32 %v843, %v843
        %v879 = vmul.f32 %v847, %v847
        %v880 = vmul.f32 %v849, %v849
        %v881 = vmul.f32 %v851, %v851
        %v882 = vmul.f32 %v853, %v853
        %v883 = vmul.f32 %v857, %v857
        %v884 = vmul.f32 %v859, %v859
        %v885 = vmul.f32 %v861, %v861
        %v886 = vmul.f32 %v863, %v863
        %v887 = vmul.f32 %v867, %v867
        %v888 = vmul.f32 %v869, %v869
        %v889 = vmul.f32 %v871, %v871
        %v890 = vmul.f32 %v873, %v873
        %v891 = vstv %s302
        %v892 = vmul.f32 %v891, %v875
        %v893 = vmul.f32 %v891, %v876
        %v894 = vmul.f32 %v891, %v877
        %v895 = vmul.f32 %v891, %v878
        %v896 = vmul.f32 %v891, %v879
        %v897 = vmul.f32 %v891, %v880
        %v898 = vmul.f32 %v891, %v881
        %v899 = vmul.f32 %v891, %v882
        %v900 = vmul.f32 %v891, %v883
        %v901 = vmul.f32 %v891, %v884
        %v902 = vmul.f32 %v891, %v885
        %v903 = vmul.f32 %v891, %v886
        %v904 = vmul.f32 %v891, %v887
        %v905 = vmul.f32 %v891, %v888
        %v906 = vmul.f32 %v891, %v889
        %v907 = vmul.f32 %v891, %v890
        %v908 = vstv %s304
        %v909 = vmul.f32 %v908, %v837
        %v910 = vmul.f32 %v908, %v839
        %v911 = vmul.f32 %v908, %v841
        %v912 = vmul.f32 %v908, %v843
        %v913 = vmul.f32 %v908, %v847
        %v914 = vmul.f32 %v908, %v849
        %v915 = vmul.f32 %v908, %v851
        %v916 = vmul.f32 %v908, %v853
        %v917 = vmul.f32 %v908, %v857
        %v918 = vmul.f32 %v908, %v859
        %v919 = vmul.f32 %v908, %v861
        %v920 = vmul.f32 %v908, %v863
        %v921 = vmul.f32 %v908, %v867
        %v922 = vmul.f32 %v908, %v869
        %v923 = vmul.f32 %v908, %v871
        %v924 = vmul.f32 %v908, %v873
        %v925 = vstv %s306
        %v926 = vadd.f32 %v909, %v925
        %v927 = vadd.f32 %v910, %v925
        %v928 = vadd.f32 %v911, %v925
        %v929 = vadd.f32 %v912, %v925
        %v930 = vadd.f32 %v913, %v925
        %v931 = vadd.f32 %v914, %v925
        %v932 = vadd.f32 %v915, %v925
        %v933 = vadd.f32 %v916, %v925
        %v934 = vadd.f32 %v917, %v925
        %v935 = vadd.f32 %v918, %v925
        %v936 = vadd.f32 %v919, %v925
        %v937 = vadd.f32 %v920, %v925
        %v938 = vadd.f32 %v921, %v925
        %v939 = vadd.f32 %v922, %v925
        %v940 = vadd.f32 %v923, %v925
        %v941 = vadd.f32 %v924, %v925
        %v942 = vadd.f32 %v892, %v926
        %v943 = vadd.f32 %v893, %v927
        %v944 = vadd.f32 %v894, %v928
        %v945 = vadd.f32 %v895, %v929
        %v946 = vadd.f32 %v896, %v930
        %v947 = vadd.f32 %v897, %v931
        %v948 = vadd.f32 %v898, %v932
        %v949 = vadd.f32 %v899, %v933
        %v950 = vadd.f32 %v900, %v934
        %v951 = vadd.f32 %v901, %v935
        %v952 = vadd.f32 %v902, %v936
        %v953 = vadd.f32 %v903, %v937
        %v954 = vadd.f32 %v904, %v938
        %v955 = vadd.f32 %v905, %v939
        %v956 = vadd.f32 %v906, %v940
        %v957 = vadd.f32 %v907, %v941
        %v958 = vrcp.pop %v942
        %v959 = vrcp.pop %v943
        %v960 = vrcp.pop %v944
        %v961 = vrcp.pop %v945
        %v962 = vrcp.pop %v946
        %v963 = vrcp.pop %v947
        %v964 = vrcp.pop %v948
        %v965 = vrcp.pop %v949
        %v966 = vrcp.pop %v950
        %v967 = vrcp.pop %v951
        %v968 = vrcp.pop %v952
        %v969 = vrcp.pop %v953
        %v970 = vrcp.pop %v954
        %v971 = vrcp.pop %v955
        %v972 = vrcp.pop %v956
        %v973 = vrcp.pop %v957
        %v974 = vstv %s300
        %v975 = vmul.f32 %v974, %v837
        %v976 = vmul.f32 %v974, %v839
        %v977 = vmul.f32 %v974, %v841
        %v978 = vmul.f32 %v974, %v843
        %v979 = vmul.f32 %v974, %v847
        %v980 = vmul.f32 %v974, %v849
        %v981 = vmul.f32 %v974, %v851
        %v982 = vmul.f32 %v974, %v853
        %v983 = vmul.f32 %v974, %v857
        %v984 = vmul.f32 %v974, %v859
        %v985 = vmul.f32 %v974, %v861
        %v986 = vmul.f32 %v974, %v863
        %v987 = vmul.f32 %v974, %v867
        %v988 = vmul.f32 %v974, %v869
        %v989 = vmul.f32 %v974, %v871
        %v990 = vmul.f32 %v974, %v873
        %v991 = vstv %s301
        %v992 = vadd.f32 %v975, %v991
        %v993 = vadd.f32 %v976, %v991
        %v994 = vadd.f32 %v977, %v991
        %v995 = vadd.f32 %v978, %v991
        %v996 = vadd.f32 %v979, %v991
        %v997 = vadd.f32 %v980, %v991
        %v998 = vadd.f32 %v981, %v991
        %v999 = vadd.f32 %v982, %v991
        %v1000 = vadd.f32 %v983, %v991
        %v1001 = vadd.f32 %v984, %v991
        %v1002 = vadd.f32 %v985, %v991
        %v1003 = vadd.f32 %v986, %v991
        %v1004 = vadd.f32 %v987, %v991
        %v1005 = vadd.f32 %v988, %v991
        %v1006 = vadd.f32 %v989, %v991
        %v1007 = vadd.f32 %v990, %v991
        %v1008 = vmul.f32 %v992, %v875
        %v1009 = vmul.f32 %v993, %v876
        %v1010 = vmul.f32 %v994, %v877
        %v1011 = vmul.f32 %v995, %v878
        %v1012 = vmul.f32 %v996, %v879
        %v1013 = vmul.f32 %v997, %v880
        %v1014 = vmul.f32 %v998, %v881
        %v1015 = vmul.f32 %v999, %v882
        %v1016 = vmul.f32 %v1000, %v883
        %v1017 = vmul.f32 %v1001, %v884
        %v1018 = vmul.f32 %v1002, %v885
        %v1019 = vmul.f32 %v1003, %v886
        %v1020 = vmul.f32 %v1004, %v887
        %v1021 = vmul.f32 %v1005, %v888
        %v1022 = vmul.f32 %v1006, %v889
        %v1023 = vmul.f32 %v1007, %v890
        %v1024 = vstv %s303
        %v1025 = vmul.f32 %v1024, %v837
        %v1026 = vmul.f32 %v1024, %v839
        %v1027 = vmul.f32 %v1024, %v841
        %v1028 = vmul.f32 %v1024, %v843
        %v1029 = vmul.f32 %v1024, %v847
        %v1030 = vmul.f32 %v1024, %v849
        %v1031 = vmul.f32 %v1024, %v851
        %v1032 = vmul.f32 %v1024, %v853
        %v1033 = vmul.f32 %v1024, %v857
        %v1034 = vmul.f32 %v1024, %v859
        %v1035 = vmul.f32 %v1024, %v861
        %v1036 = vmul.f32 %v1024, %v863
        %v1037 = vmul.f32 %v1024, %v867
        %v1038 = vmul.f32 %v1024, %v869
        %v1039 = vmul.f32 %v1024, %v871
        %v1040 = vmul.f32 %v1024, %v873
        %v1041 = vstv %s305
        %v1042 = vadd.f32 %v1025, %v1041
        %v1043 = vadd.f32 %v1026, %v1041
        %v1044 = vadd.f32 %v1027, %v1041
        %v1045 = vadd.f32 %v1028, %v1041
        %v1046 = vadd.f32 %v1029, %v1041
        %v1047 = vadd.f32 %v1030, %v1041
        %v1048 = vadd.f32 %v1031, %v1041
        %v1049 = vadd.f32 %v1032, %v1041
        %v1050 = vadd.f32 %v1033, %v1041
        %v1051 = vadd.f32 %v1034, %v1041
        %v1052 = vadd.f32 %v1035, %v1041
        %v1053 = vadd.f32 %v1036, %v1041
        %v1054 = vadd.f32 %v1037, %v1041
        %v1055 = vadd.f32 %v1038, %v1041
        %v1056 = vadd.f32 %v1039, %v1041
        %v1057 = vadd.f32 %v1040, %v1041
        %v1058 = vadd.f32 %v1008, %v1042
        %v1059 = vadd.f32 %v1009, %v1043
        %v1060 = vadd.f32 %v1010, %v1044
        %v1061 = vadd.f32 %v1011, %v1045
        %v1062 = vadd.f32 %v1012, %v1046
        %v1063 = vadd.f32 %v1013, %v1047
        %v1064 = vadd.f32 %v1014, %v1048
        %v1065 = vadd.f32 %v1015, %v1049
        %v1066 = vadd.f32 %v1016, %v1050
        %v1067 = vadd.f32 %v1017, %v1051
        %v1068 = vadd.f32 %v1018, %v1052
        %v1069 = vadd.f32 %v1019, %v1053
        %v1070 = vadd.f32 %v1020, %v1054
        %v1071 = vadd.f32 %v1021, %v1055
        %v1072 = vadd.f32 %v1022, %v1056
        %v1073 = vadd.f32 %v1023, %v1057
        %v1074 = vmul.f32 %v1058, %v958
        %v1075 = vmul.f32 %v1059, %v959
        %v1076 = vmul.f32 %v1060, %v960
        %v1077 = vmul.f32 %v1061, %v961
        %v1078 = vmul.f32 %v1062, %v962
        %v1079 = vmul.f32 %v1063, %v963
        %v1080 = vmul.f32 %v1064, %v964
        %v1081 = vmul.f32 %v1065, %v965
        %v1082 = vmul.f32 %v1066, %v966
        %v1083 = vmul.f32 %v1067, %v967
        %v1084 = vmul.f32 %v1068, %v968
        %v1085 = vmul.f32 %v1069, %v969
        %v1086 = vmul.f32 %v1070, %v970
        %v1087 = vmul.f32 %v1071, %v971
        %v1088 = vmul.f32 %v1072, %v972
        %v1089 = vmul.f32 %v1073, %v973
        %s1090 = scalar_lea.vmem %s3, 32
        %v1091 = vld [vmem:[%s1090] sm:$0xf]
        %v1092 = vld [vmem:[%s1090 + $0x4] sm:$0xf]
        %v1093 = vld [vmem:[%s1090 + $0x8] sm:$0xf]
        %v1094 = vld [vmem:[%s1090 + $0xc] sm:$0xf]
        %v1095 = vld [vmem:[%s1090 + $0x10] sm:$0xf]
        %v1096 = vld [vmem:[%s1090 + $0x14] sm:$0xf]
        %v1097 = vld [vmem:[%s1090 + $0x18] sm:$0xf]
        %v1098 = vld [vmem:[%s1090 + $0x1c] sm:$0xf]
        %v1099 = vpack.c.bf16 %v1076, %v1074
        %v1100 = vpack.c.bf16 %v1077, %v1075
        %v1101 = vpack.c.bf16 %v1080, %v1078
        %v1102 = vpack.c.bf16 %v1081, %v1079
        %v1103 = vpack.c.bf16 %v1084, %v1082
        %v1104 = vpack.c.bf16 %v1085, %v1083
        %v1105 = vpack.c.bf16 %v1088, %v1086
        %v1106 = vpack.c.bf16 %v1089, %v1087
        %s1107 = scalar_lea.vmem %s4, 128
        %v1108 = vld [vmem:[%s1107] sm:$0xff]
        %v1109 = vld [vmem:[%s1107 + $0x8] sm:$0xff]
        %v1110 = vld [vmem:[%s1107 + $0x10] sm:$0xff]
        %v1111 = vld [vmem:[%s1107 + $0x18] sm:$0xff]
        %v1112 = vld [vmem:[%s1107 + $0x20] sm:$0xff]
        %v1113 = vld [vmem:[%s1107 + $0x28] sm:$0xff]
        %v1114 = vld [vmem:[%s1107 + $0x30] sm:$0xff]
        %v1115 = vld [vmem:[%s1107 + $0x38] sm:$0xff]
        %1117 = vset.pattern.permute.xlu0 0
        %1118 = vperm.xlu0 %1117, %v1108
        %v1119 = vpop.permute.xlu0 %1118
        %1122 = vset.pattern.permute.xlu0 0
        %1123 = vperm.xlu0 %1122, %v1109
        %v1124 = vpop.permute.xlu0 %1123
        %1127 = vset.pattern.permute.xlu0 0
        %1128 = vperm.xlu0 %1127, %v1110
        %v1129 = vpop.permute.xlu0 %1128
        %1132 = vset.pattern.permute.xlu0 0
        %1133 = vperm.xlu0 %1132, %v1111
        %v1134 = vpop.permute.xlu0 %1133
        %1137 = vset.pattern.permute.xlu0 0
        %1138 = vperm.xlu0 %1137, %v1112
        %v1139 = vpop.permute.xlu0 %1138
        %1142 = vset.pattern.permute.xlu0 0
        %1143 = vperm.xlu0 %1142, %v1113
        %v1144 = vpop.permute.xlu0 %1143
        %1147 = vset.pattern.permute.xlu0 0
        %1148 = vperm.xlu0 %1147, %v1114
        %v1149 = vpop.permute.xlu0 %1148
        %1152 = vset.pattern.permute.xlu0 0
        %1153 = vperm.xlu0 %1152, %v1115
        %v1154 = vpop.permute.xlu0 %1153
        %v1164 = vunpack.c.l.b16 %v1091
        %v1165 = vunpack.c.l.b16 %v1092
        %v1166 = vunpack.c.l.b16 %v1093
        %v1167 = vunpack.c.l.b16 %v1094
        %v1168 = vunpack.c.l.b16 %v1095
        %v1169 = vunpack.c.l.b16 %v1096
        %v1170 = vunpack.c.l.b16 %v1097
        %v1171 = vunpack.c.l.b16 %v1098
        %v1172 = vpack.c.b16 %v1165, %v1164
        %v1173 = vpack.c.b16 %v1167, %v1166
        %v1174 = vpack.c.b16 %v1169, %v1168
        %v1175 = vpack.c.b16 %v1171, %v1170
        %v1177 = vsel %vm789, %v1172, 0
        %v1180 = vsel %vm789, %v1173, 0
        %v1183 = vsel %vm789, %v1174, 0
        %v1186 = vsel %vm789, %v1175, 0
        %1188 = vmatprep.subr.bf16.mxu0 %v1100
        %1189 = vmatpush1.bf16.msra.mxu0 %v1099
        %1190 = vmatprep.subr.bf16.mxu0 %v1102
        %1191 = vmatpush1.bf16.msra.mxu0 %v1101
        %1192 = vmatprep.subr.bf16.mxu0 %v1104
        %1193 = vmatpush1.bf16.msra.mxu0 %v1103
        %1194 = vmatprep.subr.bf16.mxu0 %v1106
        %1195 = vmatpush1.bf16.msra.mxu0 %v1105
        %1196 = vmatprep.subr.bf16.mxu0 0
        %1197 = vmatpush1.bf16.msra.mxu0 0
        %1198 = vmatprep.subr.bf16.mxu0 0
        %1199 = vmatpush1.bf16.msra.mxu0 0
        %1200 = vmatprep.subr.bf16.mxu0 0
        %1201 = vmatpush1.bf16.msra.mxu0 0
        %1202 = vmatprep.subr.bf16.mxu0 0
        %1203 = vmatpush1.bf16.msra.mxu0 0
        %1204 = vmatprep.subr.bf16.mxu0 0
        %1205 = vmatpush1.bf16.msra.mxu0 0
        %1206 = vmatprep.subr.bf16.mxu0 0
        %1207 = vmatpush1.bf16.msra.mxu0 0
        %1208 = vmatprep.subr.bf16.mxu0 0
        %1209 = vmatpush1.bf16.msra.mxu0 0
        %1210 = vmatprep.subr.bf16.mxu0 0
        %1211 = vmatpush1.bf16.msra.mxu0 0
        %1212 = vmatprep.subr.bf16.mxu0 0
        %1213 = vmatpush1.bf16.msra.mxu0 0
        %1214 = vmatprep.subr.bf16.mxu0 0
        %1215 = vmatpush1.bf16.msra.mxu0 0
        %1216 = vmatprep.subr.bf16.mxu0 0
        %1217 = vmatpush1.bf16.msra.mxu0 0
        %1218 = vmatprep.subr.bf16.mxu0 0
        %1219 = vmatpush1.bf16.msra.mxu0 0
        %1220 = vmatprep.mubr.bf16.mxu0 0
        %1221 = vmatmul.mubr.bf16.gmra.mrb[0].mxu0 %v1177
        %v1222 = vpop.f32.mrb[0].mxu0
        %v1223 = vadd.f32 %v1119, %v1222
        %v1224 = vpop.f32.mrb[0].mxu0
        %v1225 = vadd.f32 %v1119, %v1224
        %v1226 = vpop.f32.mrb[0].mxu0
        %v1227 = vadd.f32 %v1124, %v1226
        %v1228 = vpop.f32.mrb[0].mxu0
        %v1229 = vadd.f32 %v1124, %v1228
        %1230 = vmatprep.mubr.bf16.mxu0 0
        %1231 = vmatmul.mubr.bf16.gmra.mrb[0].mxu0 %v1180
        %v1232 = vpop.f32.mrb[0].mxu0
        %v1233 = vadd.f32 %v1129, %v1232
        %v1234 = vpop.f32.mrb[0].mxu0
        %v1235 = vadd.f32 %v1129, %v1234
        %v1236 = vpop.f32.mrb[0].mxu0
        %v1237 = vadd.f32 %v1134, %v1236
        %v1238 = vpop.f32.mrb[0].mxu0
        %v1239 = vadd.f32 %v1134, %v1238
        %1240 = vmatprep.mubr.bf16.mxu0 0
        %1241 = vmatmul.mubr.bf16.gmra.mrb[0].mxu0 %v1183
        %v1242 = vpop.f32.mrb[0].mxu0
        %v1243 = vadd.f32 %v1139, %v1242
        %v1244 = vpop.f32.mrb[0].mxu0
        %v1245 = vadd.f32 %v1139, %v1244
        %v1246 = vpop.f32.mrb[0].mxu0
        %v1247 = vadd.f32 %v1144, %v1246
        %v1248 = vpop.f32.mrb[0].mxu0
        %v1249 = vadd.f32 %v1144, %v1248
        %1250 = vmatprep.mubr.bf16.mxu0 0
        %1251 = vmatmul.mubr.bf16.gmra.mrb[0].mxu0 %v1186
        %v1252 = vpop.f32.mrb[0].mxu0
        %v1253 = vadd.f32 %v1149, %v1252
        %v1254 = vpop.f32.mrb[0].mxu0
        %v1255 = vadd.f32 %v1149, %v1254
        %v1256 = vpop.f32.mrb[0].mxu0
        %v1257 = vadd.f32 %v1154, %v1256
        %v1258 = vpop.f32.mrb[0].mxu0
        %v1259 = vadd.f32 %v1154, %v1258
        %1260 = vdwg.mxu0
        %v1261 = vmul.f32 %v1223, %v1223
        %v1262 = vmul.f32 %v1225, %v1225
        %v1263 = vmul.f32 %v1227, %v1227
        %v1264 = vmul.f32 %v1229, %v1229
        %v1265 = vmul.f32 %v1233, %v1233
        %v1266 = vmul.f32 %v1235, %v1235
        %v1267 = vmul.f32 %v1237, %v1237
        %v1268 = vmul.f32 %v1239, %v1239
        %v1269 = vmul.f32 %v1243, %v1243
        %v1270 = vmul.f32 %v1245, %v1245
        %v1271 = vmul.f32 %v1247, %v1247
        %v1272 = vmul.f32 %v1249, %v1249
        %v1273 = vmul.f32 %v1253, %v1253
        %v1274 = vmul.f32 %v1255, %v1255
        %v1275 = vmul.f32 %v1257, %v1257
        %v1276 = vmul.f32 %v1259, %v1259
        %v1277 = vstv %s309
        %v1278 = vmul.f32 %v1277, %v1261
        %v1279 = vmul.f32 %v1277, %v1262
        %v1280 = vmul.f32 %v1277, %v1263
        %v1281 = vmul.f32 %v1277, %v1264
        %v1282 = vmul.f32 %v1277, %v1265
        %v1283 = vmul.f32 %v1277, %v1266
        %v1284 = vmul.f32 %v1277, %v1267
        %v1285 = vmul.f32 %v1277, %v1268
        %v1286 = vmul.f32 %v1277, %v1269
        %v1287 = vmul.f32 %v1277, %v1270
        %v1288 = vmul.f32 %v1277, %v1271
        %v1289 = vmul.f32 %v1277, %v1272
        %v1290 = vmul.f32 %v1277, %v1273
        %v1291 = vmul.f32 %v1277, %v1274
        %v1292 = vmul.f32 %v1277, %v1275
        %v1293 = vmul.f32 %v1277, %v1276
        %v1294 = vstv %s311
        %v1295 = vmul.f32 %v1294, %v1223
        %v1296 = vmul.f32 %v1294, %v1225
        %v1297 = vmul.f32 %v1294, %v1227
        %v1298 = vmul.f32 %v1294, %v1229
        %v1299 = vmul.f32 %v1294, %v1233
        %v1300 = vmul.f32 %v1294, %v1235
        %v1301 = vmul.f32 %v1294, %v1237
        %v1302 = vmul.f32 %v1294, %v1239
        %v1303 = vmul.f32 %v1294, %v1243
        %v1304 = vmul.f32 %v1294, %v1245
        %v1305 = vmul.f32 %v1294, %v1247
        %v1306 = vmul.f32 %v1294, %v1249
        %v1307 = vmul.f32 %v1294, %v1253
        %v1308 = vmul.f32 %v1294, %v1255
        %v1309 = vmul.f32 %v1294, %v1257
        %v1310 = vmul.f32 %v1294, %v1259
        %v1311 = vstv %s313
        %v1312 = vadd.f32 %v1295, %v1311
        %v1313 = vadd.f32 %v1296, %v1311
        %v1314 = vadd.f32 %v1297, %v1311
        %v1315 = vadd.f32 %v1298, %v1311
        %v1316 = vadd.f32 %v1299, %v1311
        %v1317 = vadd.f32 %v1300, %v1311
        %v1318 = vadd.f32 %v1301, %v1311
        %v1319 = vadd.f32 %v1302, %v1311
        %v1320 = vadd.f32 %v1303, %v1311
        %v1321 = vadd.f32 %v1304, %v1311
        %v1322 = vadd.f32 %v1305, %v1311
        %v1323 = vadd.f32 %v1306, %v1311
        %v1324 = vadd.f32 %v1307, %v1311
        %v1325 = vadd.f32 %v1308, %v1311
        %v1326 = vadd.f32 %v1309, %v1311
        %v1327 = vadd.f32 %v1310, %v1311
        %v1328 = vadd.f32 %v1278, %v1312
        %v1329 = vadd.f32 %v1279, %v1313
        %v1330 = vadd.f32 %v1280, %v1314
        %v1331 = vadd.f32 %v1281, %v1315
        %v1332 = vadd.f32 %v1282, %v1316
        %v1333 = vadd.f32 %v1283, %v1317
        %v1334 = vadd.f32 %v1284, %v1318
        %v1335 = vadd.f32 %v1285, %v1319
        %v1336 = vadd.f32 %v1286, %v1320
        %v1337 = vadd.f32 %v1287, %v1321
        %v1338 = vadd.f32 %v1288, %v1322
        %v1339 = vadd.f32 %v1289, %v1323
        %v1340 = vadd.f32 %v1290, %v1324
        %v1341 = vadd.f32 %v1291, %v1325
        %v1342 = vadd.f32 %v1292, %v1326
        %v1343 = vadd.f32 %v1293, %v1327
        %v1344 = vrcp.pop %v1328
        %v1345 = vrcp.pop %v1329
        %v1346 = vrcp.pop %v1330
        %v1347 = vrcp.pop %v1331
        %v1348 = vrcp.pop %v1332
        %v1349 = vrcp.pop %v1333
        %v1350 = vrcp.pop %v1334
        %v1351 = vrcp.pop %v1335
        %v1352 = vrcp.pop %v1336
        %v1353 = vrcp.pop %v1337
        %v1354 = vrcp.pop %v1338
        %v1355 = vrcp.pop %v1339
        %v1356 = vrcp.pop %v1340
        %v1357 = vrcp.pop %v1341
        %v1358 = vrcp.pop %v1342
        %v1359 = vrcp.pop %v1343
        %v1360 = vstv %s307
        %v1361 = vmul.f32 %v1360, %v1223
        %v1362 = vmul.f32 %v1360, %v1225
        %v1363 = vmul.f32 %v1360, %v1227
        %v1364 = vmul.f32 %v1360, %v1229
        %v1365 = vmul.f32 %v1360, %v1233
        %v1366 = vmul.f32 %v1360, %v1235
        %v1367 = vmul.f32 %v1360, %v1237
        %v1368 = vmul.f32 %v1360, %v1239
        %v1369 = vmul.f32 %v1360, %v1243
        %v1370 = vmul.f32 %v1360, %v1245
        %v1371 = vmul.f32 %v1360, %v1247
        %v1372 = vmul.f32 %v1360, %v1249
        %v1373 = vmul.f32 %v1360, %v1253
        %v1374 = vmul.f32 %v1360, %v1255
        %v1375 = vmul.f32 %v1360, %v1257
        %v1376 = vmul.f32 %v1360, %v1259
        %v1377 = vstv %s308
        %v1378 = vadd.f32 %v1361, %v1377
        %v1379 = vadd.f32 %v1362, %v1377
        %v1380 = vadd.f32 %v1363, %v1377
        %v1381 = vadd.f32 %v1364, %v1377
        %v1382 = vadd.f32 %v1365, %v1377
        %v1383 = vadd.f32 %v1366, %v1377
        %v1384 = vadd.f32 %v1367, %v1377
        %v1385 = vadd.f32 %v1368, %v1377
        %v1386 = vadd.f32 %v1369, %v1377
        %v1387 = vadd.f32 %v1370, %v1377
        %v1388 = vadd.f32 %v1371, %v1377
        %v1389 = vadd.f32 %v1372, %v1377
        %v1390 = vadd.f32 %v1373, %v1377
        %v1391 = vadd.f32 %v1374, %v1377
        %v1392 = vadd.f32 %v1375, %v1377
        %v1393 = vadd.f32 %v1376, %v1377
        %v1394 = vmul.f32 %v1378, %v1261
        %v1395 = vmul.f32 %v1379, %v1262
        %v1396 = vmul.f32 %v1380, %v1263
        %v1397 = vmul.f32 %v1381, %v1264
        %v1398 = vmul.f32 %v1382, %v1265
        %v1399 = vmul.f32 %v1383, %v1266
        %v1400 = vmul.f32 %v1384, %v1267
        %v1401 = vmul.f32 %v1385, %v1268
        %v1402 = vmul.f32 %v1386, %v1269
        %v1403 = vmul.f32 %v1387, %v1270
        %v1404 = vmul.f32 %v1388, %v1271
        %v1405 = vmul.f32 %v1389, %v1272
        %v1406 = vmul.f32 %v1390, %v1273
        %v1407 = vmul.f32 %v1391, %v1274
        %v1408 = vmul.f32 %v1392, %v1275
        %v1409 = vmul.f32 %v1393, %v1276
        %v1410 = vstv %s310
        %v1411 = vmul.f32 %v1410, %v1223
        %v1412 = vmul.f32 %v1410, %v1225
        %v1413 = vmul.f32 %v1410, %v1227
        %v1414 = vmul.f32 %v1410, %v1229
        %v1415 = vmul.f32 %v1410, %v1233
        %v1416 = vmul.f32 %v1410, %v1235
        %v1417 = vmul.f32 %v1410, %v1237
        %v1418 = vmul.f32 %v1410, %v1239
        %v1419 = vmul.f32 %v1410, %v1243
        %v1420 = vmul.f32 %v1410, %v1245
        %v1421 = vmul.f32 %v1410, %v1247
        %v1422 = vmul.f32 %v1410, %v1249
        %v1423 = vmul.f32 %v1410, %v1253
        %v1424 = vmul.f32 %v1410, %v1255
        %v1425 = vmul.f32 %v1410, %v1257
        %v1426 = vmul.f32 %v1410, %v1259
        %v1427 = vstv %s312
        %v1428 = vadd.f32 %v1411, %v1427
        %v1429 = vadd.f32 %v1412, %v1427
        %v1430 = vadd.f32 %v1413, %v1427
        %v1431 = vadd.f32 %v1414, %v1427
        %v1432 = vadd.f32 %v1415, %v1427
        %v1433 = vadd.f32 %v1416, %v1427
        %v1434 = vadd.f32 %v1417, %v1427
        %v1435 = vadd.f32 %v1418, %v1427
        %v1436 = vadd.f32 %v1419, %v1427
        %v1437 = vadd.f32 %v1420, %v1427
        %v1438 = vadd.f32 %v1421, %v1427
        %v1439 = vadd.f32 %v1422, %v1427
        %v1440 = vadd.f32 %v1423, %v1427
        %v1441 = vadd.f32 %v1424, %v1427
        %v1442 = vadd.f32 %v1425, %v1427
        %v1443 = vadd.f32 %v1426, %v1427
        %v1444 = vadd.f32 %v1394, %v1428
        %v1445 = vadd.f32 %v1395, %v1429
        %v1446 = vadd.f32 %v1396, %v1430
        %v1447 = vadd.f32 %v1397, %v1431
        %v1448 = vadd.f32 %v1398, %v1432
        %v1449 = vadd.f32 %v1399, %v1433
        %v1450 = vadd.f32 %v1400, %v1434
        %v1451 = vadd.f32 %v1401, %v1435
        %v1452 = vadd.f32 %v1402, %v1436
        %v1453 = vadd.f32 %v1403, %v1437
        %v1454 = vadd.f32 %v1404, %v1438
        %v1455 = vadd.f32 %v1405, %v1439
        %v1456 = vadd.f32 %v1406, %v1440
        %v1457 = vadd.f32 %v1407, %v1441
        %v1458 = vadd.f32 %v1408, %v1442
        %v1459 = vadd.f32 %v1409, %v1443
        %v1460 = vmul.f32 %v1444, %v1344
        %v1461 = vmul.f32 %v1445, %v1345
        %v1462 = vmul.f32 %v1446, %v1346
        %v1463 = vmul.f32 %v1447, %v1347
        %v1464 = vmul.f32 %v1448, %v1348
        %v1465 = vmul.f32 %v1449, %v1349
        %v1466 = vmul.f32 %v1450, %v1350
        %v1467 = vmul.f32 %v1451, %v1351
        %v1468 = vmul.f32 %v1452, %v1352
        %v1469 = vmul.f32 %v1453, %v1353
        %v1470 = vmul.f32 %v1454, %v1354
        %v1471 = vmul.f32 %v1455, %v1355
        %v1472 = vmul.f32 %v1456, %v1356
        %v1473 = vmul.f32 %v1457, %v1357
        %v1474 = vmul.f32 %v1458, %v1358
        %v1475 = vmul.f32 %v1459, %v1359
        %s1476 = scalar_lea.vmem %s3, 64
        %v1477 = vld [vmem:[%s1476] sm:$0xf]
        %v1478 = vld [vmem:[%s1476 + $0x4] sm:$0xf]
        %v1479 = vld [vmem:[%s1476 + $0x8] sm:$0xf]
        %v1480 = vld [vmem:[%s1476 + $0xc] sm:$0xf]
        %v1481 = vld [vmem:[%s1476 + $0x10] sm:$0xf]
        %v1482 = vld [vmem:[%s1476 + $0x14] sm:$0xf]
        %v1483 = vld [vmem:[%s1476 + $0x18] sm:$0xf]
        %v1484 = vld [vmem:[%s1476 + $0x1c] sm:$0xf]
        %v1485 = vpack.c.bf16 %v1462, %v1460
        %v1486 = vpack.c.bf16 %v1463, %v1461
        %v1487 = vpack.c.bf16 %v1466, %v1464
        %v1488 = vpack.c.bf16 %v1467, %v1465
        %v1489 = vpack.c.bf16 %v1470, %v1468
        %v1490 = vpack.c.bf16 %v1471, %v1469
        %v1491 = vpack.c.bf16 %v1474, %v1472
        %v1492 = vpack.c.bf16 %v1475, %v1473
        %s1493 = scalar_lea.vmem %s4, 192
        %v1494 = vld [vmem:[%s1493] sm:$0xff]
        %v1495 = vld [vmem:[%s1493 + $0x8] sm:$0xff]
        %v1496 = vld [vmem:[%s1493 + $0x10] sm:$0xff]
        %v1497 = vld [vmem:[%s1493 + $0x18] sm:$0xff]
        %v1498 = vld [vmem:[%s1493 + $0x20] sm:$0xff]
        %v1499 = vld [vmem:[%s1493 + $0x28] sm:$0xff]
        %v1500 = vld [vmem:[%s1493 + $0x30] sm:$0xff]
        %v1501 = vld [vmem:[%s1493 + $0x38] sm:$0xff]
        %1503 = vset.pattern.permute.xlu0 0
        %1504 = vperm.xlu0 %1503, %v1494
        %v1505 = vpop.permute.xlu0 %1504
        %1508 = vset.pattern.permute.xlu0 0
        %1509 = vperm.xlu0 %1508, %v1495
        %v1510 = vpop.permute.xlu0 %1509
        %1513 = vset.pattern.permute.xlu0 0
        %1514 = vperm.xlu0 %1513, %v1496
        %v1515 = vpop.permute.xlu0 %1514
        %1518 = vset.pattern.permute.xlu0 0
        %1519 = vperm.xlu0 %1518, %v1497
        %v1520 = vpop.permute.xlu0 %1519
        %1523 = vset.pattern.permute.xlu0 0
        %1524 = vperm.xlu0 %1523, %v1498
        %v1525 = vpop.permute.xlu0 %1524
        %1528 = vset.pattern.permute.xlu0 0
        %1529 = vperm.xlu0 %1528, %v1499
        %v1530 = vpop.permute.xlu0 %1529
        %1533 = vset.pattern.permute.xlu0 0
        %1534 = vperm.xlu0 %1533, %v1500
        %v1535 = vpop.permute.xlu0 %1534
        %1538 = vset.pattern.permute.xlu0 0
        %1539 = vperm.xlu0 %1538, %v1501
        %v1540 = vpop.permute.xlu0 %1539
        %v1550 = vunpack.c.l.b16 %v1477
        %v1551 = vunpack.c.l.b16 %v1478
        %v1552 = vunpack.c.l.b16 %v1479
        %v1553 = vunpack.c.l.b16 %v1480
        %v1554 = vunpack.c.l.b16 %v1481
        %v1555 = vunpack.c.l.b16 %v1482
        %v1556 = vunpack.c.l.b16 %v1483
        %v1557 = vunpack.c.l.b16 %v1484
        %v1558 = vpack.c.b16 %v1551, %v1550
        %v1559 = vpack.c.b16 %v1553, %v1552
        %v1560 = vpack.c.b16 %v1555, %v1554
        %v1561 = vpack.c.b16 %v1557, %v1556
        %v1563 = vsel %vm789, %v1558, 0
        %v1566 = vsel %vm789, %v1559, 0
        %v1569 = vsel %vm789, %v1560, 0
        %v1572 = vsel %vm789, %v1561, 0
        %1574 = vmatprep.subr.bf16.mxu0 %v1486
        %1575 = vmatpush1.bf16.msra.mxu0 %v1485
        %1576 = vmatprep.subr.bf16.mxu0 %v1488
        %1577 = vmatpush1.bf16.msra.mxu0 %v1487
        %1578 = vmatprep.subr.bf16.mxu0 %v1490
        %1579 = vmatpush1.bf16.msra.mxu0 %v1489
        %1580 = vmatprep.subr.bf16.mxu0 %v1492
        %1581 = vmatpush1.bf16.msra.mxu0 %v1491
        %1582 = vmatprep.subr.bf16.mxu0 0
        %1583 = vmatpush1.bf16.msra.mxu0 0
        %1584 = vmatprep.subr.bf16.mxu0 0
        %1585 = vmatpush1.bf16.msra.mxu0 0
        %1586 = vmatprep.subr.bf16.mxu0 0
        %1587 = vmatpush1.bf16.msra.mxu0 0
        %1588 = vmatprep.subr.bf16.mxu0 0
        %1589 = vmatpush1.bf16.msra.mxu0 0
        %1590 = vmatprep.subr.bf16.mxu0 0
        %1591 = vmatpush1.bf16.msra.mxu0 0
        %1592 = vmatprep.subr.bf16.mxu0 0
        %1593 = vmatpush1.bf16.msra.mxu0 0
        %1594 = vmatprep.subr.bf16.mxu0 0
        %1595 = vmatpush1.bf16.msra.mxu0 0
        %1596 = vmatprep.subr.bf16.mxu0 0
        %1597 = vmatpush1.bf16.msra.mxu0 0
        %1598 = vmatprep.subr.bf16.mxu0 0
        %1599 = vmatpush1.bf16.msra.mxu0 0
        %1600 = vmatprep.subr.bf16.mxu0 0
        %1601 = vmatpush1.bf16.msra.mxu0 0
        %1602 = vmatprep.subr.bf16.mxu0 0
        %1603 = vmatpush1.bf16.msra.mxu0 0
        %1604 = vmatprep.subr.bf16.mxu0 0
        %1605 = vmatpush1.bf16.msra.mxu0 0
        %1606 = vmatprep.mubr.bf16.mxu0 0
        %1607 = vmatmul.mubr.bf16.gmra.mrb[0].mxu0 %v1563
        %v1608 = vpop.f32.mrb[0].mxu0
        %v1609 = vadd.f32 %v1505, %v1608
        %v1610 = vpop.f32.mrb[0].mxu0
        %v1611 = vadd.f32 %v1505, %v1610
        %v1612 = vpop.f32.mrb[0].mxu0
        %v1613 = vadd.f32 %v1510, %v1612
        %v1614 = vpop.f32.mrb[0].mxu0
        %v1615 = vadd.f32 %v1510, %v1614
        %1616 = vmatprep.mubr.bf16.mxu0 0
        %1617 = vmatmul.mubr.bf16.gmra.mrb[0].mxu0 %v1566
        %v1618 = vpop.f32.mrb[0].mxu0
        %v1619 = vadd.f32 %v1515, %v1618
        %v1620 = vpop.f32.mrb[0].mxu0
        %v1621 = vadd.f32 %v1515, %v1620
        %v1622 = vpop.f32.mrb[0].mxu0
        %v1623 = vadd.f32 %v1520, %v1622
        %v1624 = vpop.f32.mrb[0].mxu0
        %v1625 = vadd.f32 %v1520, %v1624
        %1626 = vmatprep.mubr.bf16.mxu0 0
        %1627 = vmatmul.mubr.bf16.gmra.mrb[0].mxu0 %v1569
        %v1628 = vpop.f32.mrb[0].mxu0
        %v1629 = vadd.f32 %v1525, %v1628
        %v1630 = vpop.f32.mrb[0].mxu0
        %v1631 = vadd.f32 %v1525, %v1630
        %v1632 = vpop.f32.mrb[0].mxu0
        %v1633 = vadd.f32 %v1530, %v1632
        %v1634 = vpop.f32.mrb[0].mxu0
        %v1635 = vadd.f32 %v1530, %v1634
        %1636 = vmatprep.mubr.bf16.mxu0 0
        %1637 = vmatmul.mubr.bf16.gmra.mrb[0].mxu0 %v1572
        %v1638 = vpop.f32.mrb[0].mxu0
        %v1639 = vadd.f32 %v1535, %v1638
        %v1640 = vpop.f32.mrb[0].mxu0
        %v1641 = vadd.f32 %v1535, %v1640
        %v1642 = vpop.f32.mrb[0].mxu0
        %v1643 = vadd.f32 %v1540, %v1642
        %v1644 = vpop.f32.mrb[0].mxu0
        %v1645 = vadd.f32 %v1540, %v1644
        %1646 = vdwg.mxu0
        %v1647 = vmul.f32 %v1609, %v1609
        %v1648 = vmul.f32 %v1611, %v1611
        %v1649 = vmul.f32 %v1613, %v1613
        %v1650 = vmul.f32 %v1615, %v1615
        %v1651 = vmul.f32 %v1619, %v1619
        %v1652 = vmul.f32 %v1621, %v1621
        %v1653 = vmul.f32 %v1623, %v1623
        %v1654 = vmul.f32 %v1625, %v1625
        %v1655 = vmul.f32 %v1629, %v1629
        %v1656 = vmul.f32 %v1631, %v1631
        %v1657 = vmul.f32 %v1633, %v1633
        %v1658 = vmul.f32 %v1635, %v1635
        %v1659 = vmul.f32 %v1639, %v1639
        %v1660 = vmul.f32 %v1641, %v1641
        %v1661 = vmul.f32 %v1643, %v1643
        %v1662 = vmul.f32 %v1645, %v1645
        %v1663 = vstv %s316
        %v1664 = vmul.f32 %v1663, %v1647
        %v1665 = vmul.f32 %v1663, %v1648
        %v1666 = vmul.f32 %v1663, %v1649
        %v1667 = vmul.f32 %v1663, %v1650
        %v1668 = vmul.f32 %v1663, %v1651
        %v1669 = vmul.f32 %v1663, %v1652
        %v1670 = vmul.f32 %v1663, %v1653
        %v1671 = vmul.f32 %v1663, %v1654
        %v1672 = vmul.f32 %v1663, %v1655
        %v1673 = vmul.f32 %v1663, %v1656
        %v1674 = vmul.f32 %v1663, %v1657
        %v1675 = vmul.f32 %v1663, %v1658
        %v1676 = vmul.f32 %v1663, %v1659
        %v1677 = vmul.f32 %v1663, %v1660
        %v1678 = vmul.f32 %v1663, %v1661
        %v1679 = vmul.f32 %v1663, %v1662
        %v1680 = vstv %s318
        %v1681 = vmul.f32 %v1680, %v1609
        %v1682 = vmul.f32 %v1680, %v1611
        %v1683 = vmul.f32 %v1680, %v1613
        %v1684 = vmul.f32 %v1680, %v1615
        %v1685 = vmul.f32 %v1680, %v1619
        %v1686 = vmul.f32 %v1680, %v1621
        %v1687 = vmul.f32 %v1680, %v1623
        %v1688 = vmul.f32 %v1680, %v1625
        %v1689 = vmul.f32 %v1680, %v1629
        %v1690 = vmul.f32 %v1680, %v1631
        %v1691 = vmul.f32 %v1680, %v1633
        %v1692 = vmul.f32 %v1680, %v1635
        %v1693 = vmul.f32 %v1680, %v1639
        %v1694 = vmul.f32 %v1680, %v1641
        %v1695 = vmul.f32 %v1680, %v1643
        %v1696 = vmul.f32 %v1680, %v1645
        %v1697 = vstv %s320
        %v1698 = vadd.f32 %v1681, %v1697
        %v1699 = vadd.f32 %v1682, %v1697
        %v1700 = vadd.f32 %v1683, %v1697
        %v1701 = vadd.f32 %v1684, %v1697
        %v1702 = vadd.f32 %v1685, %v1697
        %v1703 = vadd.f32 %v1686, %v1697
        %v1704 = vadd.f32 %v1687, %v1697
        %v1705 = vadd.f32 %v1688, %v1697
        %v1706 = vadd.f32 %v1689, %v1697
        %v1707 = vadd.f32 %v1690, %v1697
        %v1708 = vadd.f32 %v1691, %v1697
        %v1709 = vadd.f32 %v1692, %v1697
        %v1710 = vadd.f32 %v1693, %v1697
        %v1711 = vadd.f32 %v1694, %v1697
        %v1712 = vadd.f32 %v1695, %v1697
        %v1713 = vadd.f32 %v1696, %v1697
        %v1714 = vadd.f32 %v1664, %v1698
        %v1715 = vadd.f32 %v1665, %v1699
        %v1716 = vadd.f32 %v1666, %v1700
        %v1717 = vadd.f32 %v1667, %v1701
        %v1718 = vadd.f32 %v1668, %v1702
        %v1719 = vadd.f32 %v1669, %v1703
        %v1720 = vadd.f32 %v1670, %v1704
        %v1721 = vadd.f32 %v1671, %v1705
        %v1722 = vadd.f32 %v1672, %v1706
        %v1723 = vadd.f32 %v1673, %v1707
        %v1724 = vadd.f32 %v1674, %v1708
        %v1725 = vadd.f32 %v1675, %v1709
        %v1726 = vadd.f32 %v1676, %v1710
        %v1727 = vadd.f32 %v1677, %v1711
        %v1728 = vadd.f32 %v1678, %v1712
        %v1729 = vadd.f32 %v1679, %v1713
        %v1730 = vrcp.pop %v1714
        %v1731 = vrcp.pop %v1715
        %v1732 = vrcp.pop %v1716
        %v1733 = vrcp.pop %v1717
        %v1734 = vrcp.pop %v1718
        %v1735 = vrcp.pop %v1719
        %v1736 = vrcp.pop %v1720
        %v1737 = vrcp.pop %v1721
        %v1738 = vrcp.pop %v1722
        %v1739 = vrcp.pop %v1723
        %v1740 = vrcp.pop %v1724
        %v1741 = vrcp.pop %v1725
        %v1742 = vrcp.pop %v1726
        %v1743 = vrcp.pop %v1727
        %v1744 = vrcp.pop %v1728
        %v1745 = vrcp.pop %v1729
        %v1746 = vstv %s314
        %v1747 = vmul.f32 %v1746, %v1609
        %v1748 = vmul.f32 %v1746, %v1611
        %v1749 = vmul.f32 %v1746, %v1613
        %v1750 = vmul.f32 %v1746, %v1615
        %v1751 = vmul.f32 %v1746, %v1619
        %v1752 = vmul.f32 %v1746, %v1621
        %v1753 = vmul.f32 %v1746, %v1623
        %v1754 = vmul.f32 %v1746, %v1625
        %v1755 = vmul.f32 %v1746, %v1629
        %v1756 = vmul.f32 %v1746, %v1631
        %v1757 = vmul.f32 %v1746, %v1633
        %v1758 = vmul.f32 %v1746, %v1635
        %v1759 = vmul.f32 %v1746, %v1639
        %v1760 = vmul.f32 %v1746, %v1641
        %v1761 = vmul.f32 %v1746, %v1643
        %v1762 = vmul.f32 %v1746, %v1645
        %v1763 = vstv %s315
        %v1764 = vadd.f32 %v1747, %v1763
        %v1765 = vadd.f32 %v1748, %v1763
        %v1766 = vadd.f32 %v1749, %v1763
        %v1767 = vadd.f32 %v1750, %v1763
        %v1768 = vadd.f32 %v1751, %v1763
        %v1769 = vadd.f32 %v1752, %v1763
        %v1770 = vadd.f32 %v1753, %v1763
        %v1771 = vadd.f32 %v1754, %v1763
        %v1772 = vadd.f32 %v1755, %v1763
        %v1773 = vadd.f32 %v1756, %v1763
        %v1774 = vadd.f32 %v1757, %v1763
        %v1775 = vadd.f32 %v1758, %v1763
        %v1776 = vadd.f32 %v1759, %v1763
        %v1777 = vadd.f32 %v1760, %v1763
        %v1778 = vadd.f32 %v1761, %v1763
        %v1779 = vadd.f32 %v1762, %v1763
        %v1780 = vmul.f32 %v1764, %v1647
        %v1781 = vmul.f32 %v1765, %v1648
        %v1782 = vmul.f32 %v1766, %v1649
        %v1783 = vmul.f32 %v1767, %v1650
        %v1784 = vmul.f32 %v1768, %v1651
        %v1785 = vmul.f32 %v1769, %v1652
        %v1786 = vmul.f32 %v1770, %v1653
        %v1787 = vmul.f32 %v1771, %v1654
        %v1788 = vmul.f32 %v1772, %v1655
        %v1789 = vmul.f32 %v1773, %v1656
        %v1790 = vmul.f32 %v1774, %v1657
        %v1791 = vmul.f32 %v1775, %v1658
        %v1792 = vmul.f32 %v1776, %v1659
        %v1793 = vmul.f32 %v1777, %v1660
        %v1794 = vmul.f32 %v1778, %v1661
        %v1795 = vmul.f32 %v1779, %v1662
        %v1796 = vstv %s317
        %v1797 = vmul.f32 %v1796, %v1609
        %v1798 = vmul.f32 %v1796, %v1611
        %v1799 = vmul.f32 %v1796, %v1613
        %v1800 = vmul.f32 %v1796, %v1615
        %v1801 = vmul.f32 %v1796, %v1619
        %v1802 = vmul.f32 %v1796, %v1621
        %v1803 = vmul.f32 %v1796, %v1623
        %v1804 = vmul.f32 %v1796, %v1625
        %v1805 = vmul.f32 %v1796, %v1629
        %v1806 = vmul.f32 %v1796, %v1631
        %v1807 = vmul.f32 %v1796, %v1633
        %v1808 = vmul.f32 %v1796, %v1635
        %v1809 = vmul.f32 %v1796, %v1639
        %v1810 = vmul.f32 %v1796, %v1641
        %v1811 = vmul.f32 %v1796, %v1643
        %v1812 = vmul.f32 %v1796, %v1645
        %v1813 = vstv %s319
        %v1814 = vadd.f32 %v1797, %v1813
        %v1815 = vadd.f32 %v1798, %v1813
        %v1816 = vadd.f32 %v1799, %v1813
        %v1817 = vadd.f32 %v1800, %v1813
        %v1818 = vadd.f32 %v1801, %v1813
        %v1819 = vadd.f32 %v1802, %v1813
        %v1820 = vadd.f32 %v1803, %v1813
        %v1821 = vadd.f32 %v1804, %v1813
        %v1822 = vadd.f32 %v1805, %v1813
        %v1823 = vadd.f32 %v1806, %v1813
        %v1824 = vadd.f32 %v1807, %v1813
        %v1825 = vadd.f32 %v1808, %v1813
        %v1826 = vadd.f32 %v1809, %v1813
        %v1827 = vadd.f32 %v1810, %v1813
        %v1828 = vadd.f32 %v1811, %v1813
        %v1829 = vadd.f32 %v1812, %v1813
        %v1830 = vadd.f32 %v1780, %v1814
        %v1831 = vadd.f32 %v1781, %v1815
        %v1832 = vadd.f32 %v1782, %v1816
        %v1833 = vadd.f32 %v1783, %v1817
        %v1834 = vadd.f32 %v1784, %v1818
        %v1835 = vadd.f32 %v1785, %v1819
        %v1836 = vadd.f32 %v1786, %v1820
        %v1837 = vadd.f32 %v1787, %v1821
        %v1838 = vadd.f32 %v1788, %v1822
        %v1839 = vadd.f32 %v1789, %v1823
        %v1840 = vadd.f32 %v1790, %v1824
        %v1841 = vadd.f32 %v1791, %v1825
        %v1842 = vadd.f32 %v1792, %v1826
        %v1843 = vadd.f32 %v1793, %v1827
        %v1844 = vadd.f32 %v1794, %v1828
        %v1845 = vadd.f32 %v1795, %v1829
        %v1846 = vmul.f32 %v1830, %v1730
        %v1847 = vmul.f32 %v1831, %v1731
        %v1848 = vmul.f32 %v1832, %v1732
        %v1849 = vmul.f32 %v1833, %v1733
        %v1850 = vmul.f32 %v1834, %v1734
        %v1851 = vmul.f32 %v1835, %v1735
        %v1852 = vmul.f32 %v1836, %v1736
        %v1853 = vmul.f32 %v1837, %v1737
        %v1854 = vmul.f32 %v1838, %v1738
        %v1855 = vmul.f32 %v1839, %v1739
        %v1856 = vmul.f32 %v1840, %v1740
        %v1857 = vmul.f32 %v1841, %v1741
        %v1858 = vmul.f32 %v1842, %v1742
        %v1859 = vmul.f32 %v1843, %v1743
        %v1860 = vmul.f32 %v1844, %v1744
        %v1861 = vmul.f32 %v1845, %v1745
        %v1862 = vld [vmem:[%s5] sm:$0xff]
        %v1863 = vld [vmem:[%s5 + $0x8] sm:$0xff]
        %v1864 = vld [vmem:[%s5 + $0x10] sm:$0xff]
        %v1865 = vld [vmem:[%s5 + $0x18] sm:$0xff]
        %v1866 = vld [vmem:[%s5 + $0x20] sm:$0xff]
        %v1867 = vld [vmem:[%s5 + $0x28] sm:$0xff]
        %v1868 = vld [vmem:[%s5 + $0x30] sm:$0xff]
        %v1869 = vld [vmem:[%s5 + $0x38] sm:$0xff]
        %1871 = vset.pattern.permute.xlu0 0
        %1872 = vperm.xlu0 %1871, %v1862
        %v1873 = vpop.permute.xlu0 %1872
        %1876 = vset.pattern.permute.xlu0 0
        %1877 = vperm.xlu0 %1876, %v1863
        %v1878 = vpop.permute.xlu0 %1877
        %1881 = vset.pattern.permute.xlu0 0
        %1882 = vperm.xlu0 %1881, %v1864
        %v1883 = vpop.permute.xlu0 %1882
        %1886 = vset.pattern.permute.xlu0 0
        %1887 = vperm.xlu0 %1886, %v1865
        %v1888 = vpop.permute.xlu0 %1887
        %1891 = vset.pattern.permute.xlu0 0
        %1892 = vperm.xlu0 %1891, %v1866
        %v1893 = vpop.permute.xlu0 %1892
        %1896 = vset.pattern.permute.xlu0 0
        %1897 = vperm.xlu0 %1896, %v1867
        %v1898 = vpop.permute.xlu0 %1897
        %1901 = vset.pattern.permute.xlu0 0
        %1902 = vperm.xlu0 %1901, %v1868
        %v1903 = vpop.permute.xlu0 %1902
        %1906 = vset.pattern.permute.xlu0 0
        %1907 = vperm.xlu0 %1906, %v1869
        %v1908 = vpop.permute.xlu0 %1907
        %v1910 = vmul.f32 %v1873, %v1846
        %v1911 = vmul.f32 %v1873, %v1847
        %v1912 = vmul.f32 %v1878, %v1848
        %v1913 = vmul.f32 %v1878, %v1849
        %v1914 = vmul.f32 %v1883, %v1850
        %v1915 = vmul.f32 %v1883, %v1851
        %v1916 = vmul.f32 %v1888, %v1852
        %v1917 = vmul.f32 %v1888, %v1853
        %v1918 = vmul.f32 %v1893, %v1854
        %v1919 = vmul.f32 %v1893, %v1855
        %v1920 = vmul.f32 %v1898, %v1856
        %v1921 = vmul.f32 %v1898, %v1857
        %v1922 = vmul.f32 %v1903, %v1858
        %v1923 = vmul.f32 %v1903, %v1859
        %v1924 = vmul.f32 %v1908, %v1860
        %v1925 = vmul.f32 %v1908, %v1861
        %v1926 = vadd.f32 %v1910, %v1912
        %v1927 = vadd.f32 %v1926, %v1914
        %v1928 = vadd.f32 %v1927, %v1916
        %v1929 = vadd.f32 %v1928, %v1918
        %v1930 = vadd.f32 %v1929, %v1920
        %v1931 = vadd.f32 %v1930, %v1922
        %v1932 = vadd.f32 %v1931, %v1924
        %v1933 = vrot.slane %v1932, 4
        %v1934 = vadd.f32 %v1932, %v1933
        %v1935 = vrot.slane %v1934, 2
        %v1936 = vadd.f32 %v1934, %v1935
        %v1937 = vrot.slane %v1936, 1
        %v1938 = vadd.f32 %v1936, %v1937
        %v1939 = vadd.f32 %v1911, %v1913
        %v1940 = vadd.f32 %v1939, %v1915
        %v1941 = vadd.f32 %v1940, %v1917
        %v1942 = vadd.f32 %v1941, %v1919
        %v1943 = vadd.f32 %v1942, %v1921
        %v1944 = vadd.f32 %v1943, %v1923
        %v1945 = vadd.f32 %v1944, %v1925
        %v1946 = vrot.slane %v1945, 4
        %v1947 = vadd.f32 %v1945, %v1946
        %v1948 = vrot.slane %v1947, 2
        %v1949 = vadd.f32 %v1947, %v1948
        %v1950 = vrot.slane %v1949, 1
        %v1951 = vadd.f32 %v1949, %v1950
        %s1952 = scalar_lea.vmem %s4, 256
        %v1953 = vld [vmem:[%s1952] sm:$0x1]
        %1955 = vset.pattern.permute.xlu0 0
        %1956 = vperm.xlu0 %1955, %v1953
        %v1957 = vpop.permute.xlu0 %1956
        %v1959 = vadd.f32 %v1938, %v1957
        %v1960 = vadd.f32 %v1951, %v1957
        %v1963 = vcombine.low %v1959, %v1960
        %v1965 = vunpack.c.l.s4 1966171168
        %v1966 = vunpack.c.0.s8 %v1965
        %v1967 = vlaneseq
        %v1968 = vshrl.u32 %v1967, 7
        %v1969 = vsub.s32 %v1966, %v1968
        %v1970 = vrot.slane %v1963, %v1969
        %v1972 = vunpack.c.l.s4 1966171168
        %v1973 = vunpack.c.0.s8 %v1972
        %v1974 = vlaneseq
        %v1975 = vshrl.u32 %v1974, 7
        %v1976 = vsub.s32 %v1973, %v1975
        %v1977 = vrot.slane %v1970, %v1976
        %v1979 = vlaneseq
        %vm1980 = vcmp.ge.s32.totalorder %v1979, 0
        %vm1981 = vcmp.lt.s32.totalorder %v1979, 256
        %vm1982 = vmand %vm1980, %vm1981
        %1983 = vst.msk [vmem:[%s289] sm:$0x3] %vm1982, %v1977
        %s1984 = sand.u32 %s160, 1
        %s1985 = scalar_lea.sflag [#allocation3], %s1984
        %s1986 = sand.u32 %s160, 1
        %s1987 = smul.addr %s1986, 2
        %s1988 = scalar_lea.vmem [#allocation6], %s1987
        // Predicated region
        $region72: #{tpu_custom_call.1} parent=62 // pred_check
          %p1989 = pneg %p170
        $region73: #{tpu_custom_call.1} parent=62 // pred_check_branch
          %1991 = sbr.rel (%p1989) target = $region75
        $region74: #{tpu_custom_call.1} parent=62 // pred_region
          %s1992 = smul.u32 2, %s21
          %s1994 = ssub.s32 32, 32
          %1995 = vsyncadd %s1985, %s1994
          %s1996 = smul.addr %s1992, 16
          %s1997 = scalar_lea.hbm %s6, %s1996
          %s1999 = sshll.u32 %s1988, 4
          %s2000 = int_to_ptr.vmem [resolvable:$true] %s1999
          %2002 = dma.vmem_to_hbm [thread:$0]  %s2000, 32, %s1997, %s1985
        $region75: #{tpu_custom_call.1} parent=62 // pred_fallthru
          _
      $region63: #{tpu_custom_call.1} parent=5 // pred_fallthru
        _
      %p2003 = scmp.le.s32.totalorder 2, %s16
      // Predicated region
      $region76: #{tpu_custom_call.1} parent=5 // pred_check
        %p2004 = pneg %p2003
      $region77: #{tpu_custom_call.1} parent=5 // pred_check_branch
        %2006 = sbr.rel (%p2004) target = $region79
      $region78: #{tpu_custom_call.1} parent=5 // pred_region
        %s2007 = ssub.s32 %s16, 2
        // Predicated region
        $region80: #{tpu_custom_call.1} parent=78 // pred_check
          %p2008 = pneg %p176
        $region81: #{tpu_custom_call.1} parent=78 // pred_check_branch
          %2010 = sbr.rel (%p2008) target = $region83
        $region82: #{tpu_custom_call.1} parent=78 // pred_region
          %s2011 = sand.u32 %s161, 1
          %s2012 = scalar_lea.sflag [#allocation3], %s2011
          %s2013 = sand.u32 %s161, 1
          %s2014 = smul.addr %s2013, 2
          %s2015 = scalar_lea.vmem [#allocation6], %s2014
          %2016 = dma.done %s2012, 32
        $region83: #{tpu_custom_call.1} parent=78 // pred_fallthru
          _
      $region79: #{tpu_custom_call.1} parent=5 // pred_fallthru
        _
    $region6: #{tpu_custom_call.1} parent=1 // loop_footer
      %s20 = sadd.s32 1, %s16
    $region7: #{tpu_custom_call.1} parent=1 // loop_footer_branch
      %15 = sbr.rel target = $region3
    $region8: #{tpu_custom_call.1} parent=1 // loop_exit
      _
    %2017 = vsyncpa [#allocation3], 1
    %s2018 = scalar_lea.sflag [#allocation3], 1
    %2019 = vsyncpa %s2018, 1
    %2020 = vsyncpa [#allocation4], 1
    %s2021 = scalar_lea.sflag [#allocation4], 1
    %2022 = vsyncpa %s2021, 1

</llo_original>
